<compile_context>
chip_gen: v7x
topology: tpu7x:2x2x1
jax: 0.10.0
libtpu: 0.0.40
codegen_flags: <defaults>
</compile_context>

<pallas_src>
import math
import functools

import jax
import jax.numpy as jnp
from jax.experimental import pallas as pl
from jax.experimental.pallas import tpu as pltpu


# ----------------------------- in-kernel math ------------------------------

def _erf(x):
    # Abramowitz & Stegun 7.1.26 rational approximation (~1.5e-7 abs error).
    # TODO(synk): switch to jax.lax.erf if its Mosaic lowering is guaranteed.
    a1, a2, a3, a4, a5 = (0.254829592, -0.284496736, 1.421413741,
                          -1.453152027, 1.061405429)
    p = 0.3275911
    sgn = jnp.where(x >= 0.0, 1.0, -1.0)
    ax = jnp.abs(x)
    t = 1.0 / (1.0 + p * ax)
    poly = ((((a5 * t + a4) * t + a3) * t + a2) * t + a1) * t
    return sgn * (1.0 - poly * jnp.exp(-ax * ax))


def _gelu(x):
    # exact (erf-based) GELU, matching torch.nn.GELU() default
    return 0.5 * x * (1.0 + _erf(x * (1.0 / math.sqrt(2.0))))


def _layernorm(x, w, b, eps=1e-5):
    mu = jnp.mean(x, axis=-1, keepdims=True)
    var = jnp.mean(jnp.square(x - mu), axis=-1, keepdims=True)
    return (x - mu) * jax.lax.rsqrt(var + eps) * w + b


def _causal_attention(q, k, v, n_head, q_chunk, kv_chunk):
    """Multi-head causal attention.

    Heads are batched on the leading axis of a single dot_general; the KV (and
    Q) dimension is chunked with an online softmax.  Masked positions are
    filled with 0 (NOT -inf) before the softmax, exactly like the PyTorch
    module, so every chunk is processed (masked entries still contribute
    exp(-rowmax) to the denominator)."""
    T, C = q.shape
    hd = C // n_head
    scale = 1.0 / math.sqrt(hd)

    # (n_head, T, hd): heads on the leading (batch) axis -> one batched
    # dot_general per stage instead of a per-head Python loop + concat.
    qh = jnp.transpose(q.reshape(T, n_head, hd), (1, 0, 2))
    kh = jnp.transpose(k.reshape(T, n_head, hd), (1, 0, 2)).astype(jnp.bfloat16)
    vh = jnp.transpose(v.reshape(T, n_head, hd), (1, 0, 2)).astype(jnp.bfloat16)

    nq = T // q_chunk
    nk = T // kv_chunk

    # iotas hoisted out of the chunk loops (broadcast over heads).
    row_ids = jax.lax.broadcasted_iota(jnp.int32, (1, q_chunk, kv_chunk), 1)
    col_ids = jax.lax.broadcasted_iota(jnp.int32, (1, q_chunk, kv_chunk), 2)

    out_chunks = []
    # NOTE: static Python loops (trip count is tiny at these model sizes);
    # TODO(synk): for very long T move the KV loop onto a grid axis / fori_loop.
    for qi in range(nq):
        q_blk = qh[:, qi * q_chunk:(qi + 1) * q_chunk, :].astype(jnp.bfloat16)
        m = jnp.full((n_head, q_chunk, 1), -jnp.inf, jnp.float32)
        l = jnp.zeros((n_head, q_chunk, 1), jnp.float32)
        acc = jnp.zeros((n_head, q_chunk, hd), jnp.float32)
        for ki in range(nk):
            k_blk = kh[:, ki * kv_chunk:(ki + 1) * kv_chunk, :]
            v_blk = vh[:, ki * kv_chunk:(ki + 1) * kv_chunk, :]
            s = jnp.einsum('hqd,hkd->hqk', q_blk, k_blk,
                           preferred_element_type=jnp.float32) * scale
            keep = (ki * kv_chunk + col_ids) <= (qi * q_chunk + row_ids)
            s = jnp.where(keep, s, 0.0)        # PyTorch quirk: fill 0, not -inf
            m_new = jnp.maximum(m, jnp.max(s, axis=-1, keepdims=True))
            alpha = jnp.exp(m - m_new)
            p = jnp.exp(s - m_new)
            l = alpha * l + jnp.sum(p, axis=-1, keepdims=True)
            acc = alpha * acc + jnp.einsum('hqk,hkd->hqd',
                                           p.astype(jnp.bfloat16), v_blk,
                                           preferred_element_type=jnp.float32)
            m = m_new
        o = acc * pl.reciprocal(l, approx=True)            # (h, q_chunk, hd)
        out_chunks.append(jnp.transpose(o, (1, 0, 2)).reshape(q_chunk, C))
    return out_chunks[0] if nq == 1 else jnp.concatenate(out_chunks, axis=0)


# ------------------------------ Pallas kernel -------------------------------

def encoder_kernel(x_ref,
                   ln1w_ref, ln1b_ref, wqkv_ref, bqkv_ref, wp_ref, bp_ref,
                   ln2w_ref, ln2b_ref, w1_ref, b1_ref, w2_ref, b2_ref,
                   lnfw_ref, lnfb_ref,
                   o_ref,
                   act_ref,                     # VMEM scratch (T, C) f32
                   *, n_head, q_chunk, kv_chunk):
    """One transformer Block per grid step; grid = (batch, layer).

    The activation lives in `act_ref` (VMEM) across the layer axis; the final
    LayerNorm is applied and the output written only on the last layer."""
    layer = pl.program_id(1)
    n_layer = pl.num_programs(1)
    C = x_ref.shape[-1]

    @pl.when(layer == 0)
    def _():
        act_ref[...] = x_ref[0].astype(jnp.float32)

    x = act_ref[...]                            # (T, C) f32

    # ---- x = x + attn(ln1(x)) ----
    h = _layernorm(x, ln1w_ref[0], ln1b_ref[0]).astype(jnp.bfloat16)
    qkv = jnp.dot(h, wqkv_ref[0],
                  preferred_element_type=jnp.float32) + bqkv_ref[0]   # (T, 3C)
    q, k, v = qkv[:, :C], qkv[:, C:2 * C], qkv[:, 2 * C:]
    y = _causal_attention(q, k, v, n_head, q_chunk, kv_chunk)
    y = jnp.dot(y.astype(jnp.bfloat16), wp_ref[0],
                preferred_element_type=jnp.float32) + bp_ref[0]
    # attn_drop / resid_drop: identity (eval mode)
    x = x + y

    # ---- x = x + mlp(ln2(x)) ----
    h2 = _layernorm(x, ln2w_ref[0], ln2b_ref[0]).astype(jnp.bfloat16)
    mid = jnp.dot(h2, w1_ref[0],
                  preferred_element_type=jnp.float32) + b1_ref[0]
    mid = _gelu(mid)
    mlp = jnp.dot(mid.astype(jnp.bfloat16), w2_ref[0],
                  preferred_element_type=jnp.float32) + b2_ref[0]
    x = x + mlp

    act_ref[...] = x

    @pl.when(layer == n_layer - 1)
    def _():
        o_ref[0] = _layernorm(x, lnfw_ref[...], lnfb_ref[...]).astype(o_ref.dtype)


# ------------------------------ host wrapper --------------------------------

def _pick_chunk(n, target):
    """Largest chunk <= target that divides n."""
    if n <= target:
        return n
    c = target
    while n % c:
        c -= 1
    return c


def encoder_forward(x, params, n_head, *, q_chunk_target=256, kv_chunk_target=512):
    # NOTE: on v7x (64 MiB VMEM / TC) halve the chunk targets for long T.
    B, T, C = x.shape
    L = params["wqkv"].shape[0]
    q_chunk = _pick_chunk(T, q_chunk_target)
    kv_chunk = _pick_chunk(T, kv_chunk_target)

    layer_names = ("ln1_w", "ln1_b", "wqkv", "bqkv", "wp", "bp",
                   "ln2_w", "ln2_b", "w1", "b1", "w2", "b2")
    layer_args = [params[n] for n in layer_names]

    def layer_spec(a):
        nd = a.ndim - 1
        return pl.BlockSpec((1,) + a.shape[1:],
                            lambda b, l, _nd=nd: (l,) + (0,) * _nd)

    def rep_spec(a):
        nd = a.ndim
        return pl.BlockSpec(a.shape, lambda b, l, _nd=nd: (0,) * _nd)

    in_specs = ([pl.BlockSpec((1, T, C), lambda b, l: (b, 0, 0))]
                + [layer_spec(a) for a in layer_args]
                + [rep_spec(params["ln_f_w"]), rep_spec(params["ln_f_b"])])

    # Rough VMEM budget: double-buffered per-layer weights + activation blocks
    # + attention/MLP intermediates, clamped to 64 MiB so it also fits v7x.
    per_layer_w = 2 * sum(a.size * a.dtype.itemsize for a in layer_args) // L
    est = 2 * (per_layer_w
               + 3 * T * C * 4
               + 4 * n_head * q_chunk * kv_chunk * 4
               + 2 * T * 4 * C * 4) + (4 << 20)
    vmem_limit = int(max(32 << 20, min(64 << 20, est)))

    kernel = functools.partial(encoder_kernel, n_head=n_head,
                               q_chunk=q_chunk, kv_chunk=kv_chunk)
    return pl.pallas_call(
        kernel,
        out_shape=jax.ShapeDtypeStruct((B, T, C), x.dtype),
        grid=(B, L),
        in_specs=in_specs,
        out_specs=pl.BlockSpec((1, T, C), lambda b, l: (b, 0, 0)),
        scratch_shapes=[pltpu.VMEM((T, C), jnp.float32)],
        compiler_params=pltpu.CompilerParams(
            dimension_semantics=("parallel", "arbitrary"),
            vmem_limit_bytes=vmem_limit),
    )(x, *layer_args, params["ln_f_w"], params["ln_f_b"])


# ------------------------------ parameter init ------------------------------

def init_params(key, n_embd, n_layer, mm_dtype=jnp.bfloat16):
    """Deterministic synthetic weights, stacked along a leading layer axis.

    Linear weights are stored transposed to (in, out) so the kernel computes
    y = x @ W + b (matching PyTorch's y = x @ weight.T + bias); Q/K/V weights
    and biases are fused into a single (C, 3C) / (1, 3C) pair per layer.
    Matmul weights are kept in bf16 (MXU inputs); biases / LN params in f32."""
    C = n_embd

    def nrm(k, shape, std=0.02):
        return (std * jax.random.normal(k, shape)).astype(jnp.float32)

    names = ("ln1_w", "ln1_b", "wqkv", "bqkv", "wp", "bp",
             "ln2_w", "ln2_b", "w1", "b1", "w2", "b2")
    per_layer = {n: [] for n in names}
    for _ in range(n_layer):
        key, *ks = jax.random.split(key, 13)
        wq, wk, wv = nrm(ks[0], (C, C)), nrm(ks[1], (C, C)), nrm(ks[2], (C, C))
        bq, bk, bv = nrm(ks[3], (1, C)), nrm(ks[4], (1, C)), nrm(ks[5], (1, C))
        per_layer["ln1_w"].append(jnp.ones((1, C), jnp.float32))
        per_layer["ln1_b"].append(jnp.zeros((1, C), jnp.float32))
        per_layer["wqkv"].append(jnp.concatenate([wq, wk, wv], axis=1).astype(mm_dtype))
        per_layer["bqkv"].append(jnp.concatenate([bq, bk, bv], axis=1))
        per_layer["wp"].append(nrm(ks[6], (C, C)).astype(mm_dtype))
        per_layer["bp"].append(nrm(ks[7], (1, C)))
        per_layer["ln2_w"].append(jnp.ones((1, C), jnp.float32))
        per_layer["ln2_b"].append(jnp.zeros((1, C), jnp.float32))
        per_layer["w1"].append(nrm(ks[8], (C, 4 * C)).astype(mm_dtype))
        per_layer["b1"].append(nrm(ks[9], (1, 4 * C)))
        per_layer["w2"].append(nrm(ks[10], (4 * C, C)).astype(mm_dtype))
        per_layer["b2"].append(nrm(ks[11], (1, C)))

    params = {n: jnp.stack(v, axis=0) for n, v in per_layer.items()}
    params["ln_f_w"] = jnp.ones((1, C), jnp.float32)
    params["ln_f_b"] = jnp.zeros((1, C), jnp.float32)
    return params


# ----------------------------------- main ------------------------------------

if __name__ == "__main__":
    n_embd, n_layer, n_head = 32, 2, 4
    B, T = 2, 8                        # T <= block_size (=8000 in the module)

    key = jax.random.PRNGKey(0)
    key, kx, kp = jax.random.split(key, 3)
    x = jax.random.normal(kx, (B, T, n_embd), dtype=jnp.float32)
    params = init_params(kp, n_embd, n_layer)

    fwd = jax.jit(functools.partial(encoder_forward, n_head=n_head))
    out = fwd(x, params)
    jax.block_until_ready(out)

    assert out.shape == (B, T, n_embd) and out.dtype == jnp.float32
    assert bool(jnp.all(jnp.isfinite(out)))
    print("KERNEL_OK")
</pallas_src>

<mosaic_0001>
module attributes {stable_mosaic.version = 11 : i64} {
  func.func @encoder_kernel(%arg0: i32, %arg1: i32, %arg2: memref<1x8x32xf32, #tpu.memory_space<vmem>>, %arg3: memref<1x1x32xf32, #tpu.memory_space<vmem>>, %arg4: memref<1x1x32xf32, #tpu.memory_space<vmem>>, %arg5: memref<1x32x96xbf16, #tpu.memory_space<vmem>>, %arg6: memref<1x1x96xf32, #tpu.memory_space<vmem>>, %arg7: memref<1x32x32xbf16, #tpu.memory_space<vmem>>, %arg8: memref<1x1x32xf32, #tpu.memory_space<vmem>>, %arg9: memref<1x1x32xf32, #tpu.memory_space<vmem>>, %arg10: memref<1x1x32xf32, #tpu.memory_space<vmem>>, %arg11: memref<1x32x128xbf16, #tpu.memory_space<vmem>>, %arg12: memref<1x1x128xf32, #tpu.memory_space<vmem>>, %arg13: memref<1x128x32xbf16, #tpu.memory_space<vmem>>, %arg14: memref<1x1x32xf32, #tpu.memory_space<vmem>>, %arg15: memref<1x32xf32, #tpu.memory_space<vmem>>, %arg16: memref<1x32xf32, #tpu.memory_space<vmem>>, %arg17: memref<1x8x32xf32, #tpu.memory_space<vmem>>, %arg18: memref<8x32xf32, #tpu.memory_space<vmem>>) attributes {dimension_semantics = [#tpu.dimension_semantics<parallel>, #tpu.dimension_semantics<arbitrary>], iteration_bounds = array<i64: 2, 2>, scalar_prefetch = 0 : i64, scratch_operands = 1 : i64, tpu.core_type = #tpu.core_type<tc>, window_params = [{transform_indices = @transform_0, window_bounds = array<i64: 1, 8, 32>}, {transform_indices = @transform_1, window_bounds = array<i64: 1, 1, 32>}, {transform_indices = @transform_2, window_bounds = array<i64: 1, 1, 32>}, {transform_indices = @transform_3, window_bounds = array<i64: 1, 32, 96>}, {transform_indices = @transform_4, window_bounds = array<i64: 1, 1, 96>}, {transform_indices = @transform_5, window_bounds = array<i64: 1, 32, 32>}, {transform_indices = @transform_6, window_bounds = array<i64: 1, 1, 32>}, {transform_indices = @transform_7, window_bounds = array<i64: 1, 1, 32>}, {transform_indices = @transform_8, window_bounds = array<i64: 1, 1, 32>}, {transform_indices = @transform_9, window_bounds = array<i64: 1, 32, 128>}, {transform_indices = @transform_10, window_bounds = array<i64: 1, 1, 128>}, {transform_indices = @transform_11, window_bounds = array<i64: 1, 128, 32>}, {transform_indices = @transform_12, window_bounds = array<i64: 1, 1, 32>}, {pipeline_mode = #tpu.pipeline_mode<synchronous>, transform_indices = @transform_13, window_bounds = array<i64: 1, 32>}, {pipeline_mode = #tpu.pipeline_mode<synchronous>, transform_indices = @transform_14, window_bounds = array<i64: 1, 32>}, {transform_indices = @transform_15, window_bounds = array<i64: 1, 8, 32>}]} {
    %c0_i32 = arith.constant 0 : i32
    %0 = arith.cmpi eq, %arg1, %c0_i32 : i32
    %1 = arith.extui %0 : i1 to i32
    %c0_i32_0 = arith.constant 0 : i32
    %2 = arith.cmpi ne, %1, %c0_i32_0 : i32
    scf.if %2 {
      %c0_81 = arith.constant 0 : index
      %c0_82 = arith.constant 0 : index
      %c0_83 = arith.constant 0 : index
      %186 = vector.load %arg2[%c0_81, %c0_82, %c0_83] : memref<1x8x32xf32, #tpu.memory_space<vmem>>, vector<1x8x32xf32>
      %187 = vector.shape_cast %186 : vector<1x8x32xf32> to vector<8x32xf32>
      %c0_84 = arith.constant 0 : index
      %c0_85 = arith.constant 0 : index
      %188 = vector.load %arg18[%c0_84, %c0_85] : memref<8x32xf32, #tpu.memory_space<vmem>>, vector<8x32xf32>
      tpu.vector_store %arg18[%c0_84, %c0_85], %187 {strides = array<i32>} : memref<8x32xf32, #tpu.memory_space<vmem>>, vector<8x32xf32>,
    } else {
    }
    %c0 = arith.constant 0 : index
    %c0_1 = arith.constant 0 : index
    %3 = vector.load %arg18[%c0, %c0_1] : memref<8x32xf32, #tpu.memory_space<vmem>>, vector<8x32xf32>
    %c0_2 = arith.constant 0 : index
    %c0_3 = arith.constant 0 : index
    %c0_4 = arith.constant 0 : index
    %4 = vector.load %arg3[%c0_2, %c0_3, %c0_4] : memref<1x1x32xf32, #tpu.memory_space<vmem>>, vector<1x1x32xf32>
    %5 = vector.shape_cast %4 : vector<1x1x32xf32> to vector<1x32xf32>
    %c0_5 = arith.constant 0 : index
    %c0_6 = arith.constant 0 : index
    %c0_7 = arith.constant 0 : index
    %6 = vector.load %arg4[%c0_5, %c0_6, %c0_7] : memref<1x1x32xf32, #tpu.memory_space<vmem>>, vector<1x1x32xf32>
    %7 = vector.shape_cast %6 : vector<1x1x32xf32> to vector<1x32xf32>
    %cst = arith.constant dense<0.000000e+00> : vector<8xf32>
    %8 = vector.multi_reduction <add>, %3, %cst [1] : vector<8x32xf32> to vector<8xf32>
    %9 = vector.shape_cast %8 : vector<8xf32> to vector<8x1xf32>
    %cst_8 = arith.constant 3.200000e+01 : f32
    %10 = vector.broadcast %cst_8 : f32 to vector<8x1xf32>
    %11 = arith.divf %9, %10 : vector<8x1xf32>
    %12 = vector.broadcast %11 : vector<8x1xf32> to vector<8x32xf32>
    %13 = arith.subf %3, %12 : vector<8x32xf32>
    %14 = arith.mulf %13, %13 : vector<8x32xf32>
    %cst_9 = arith.constant dense<0.000000e+00> : vector<8xf32>
    %15 = vector.multi_reduction <add>, %14, %cst_9 [1] : vector<8x32xf32> to vector<8xf32>
    %16 = vector.shape_cast %15 : vector<8xf32> to vector<8x1xf32>
    %cst_10 = arith.constant 3.200000e+01 : f32
    %17 = vector.broadcast %cst_10 : f32 to vector<8x1xf32>
    %18 = arith.divf %16, %17 : vector<8x1xf32>
    %19 = vector.broadcast %11 : vector<8x1xf32> to vector<8x32xf32>
    %20 = arith.subf %3, %19 : vector<8x32xf32>
    %cst_11 = arith.constant 9.99999974E-6 : f32
    %21 = vector.broadcast %cst_11 : f32 to vector<8x1xf32>
    %22 = arith.addf %18, %21 : vector<8x1xf32>
    %23 = math.rsqrt %22 : vector<8x1xf32>
    %24 = vector.broadcast %23 : vector<8x1xf32> to vector<8x32xf32>
    %25 = arith.mulf %20, %24 : vector<8x32xf32>
    %26 = vector.broadcast %5 : vector<1x32xf32> to vector<8x32xf32>
    %27 = arith.mulf %25, %26 : vector<8x32xf32>
    %28 = vector.broadcast %7 : vector<1x32xf32> to vector<8x32xf32>
    %29 = arith.addf %27, %28 : vector<8x32xf32>
    %30 = arith.truncf %29 : vector<8x32xf32> to vector<8x32xbf16>
    %c0_12 = arith.constant 0 : index
    %c0_13 = arith.constant 0 : index
    %c0_14 = arith.constant 0 : index
    %31 = vector.load %arg5[%c0_12, %c0_13, %c0_14] : memref<1x32x96xbf16, #tpu.memory_space<vmem>>, vector<1x32x96xbf16>
    %32 = vector.shape_cast %31 : vector<1x32x96xbf16> to vector<32x96xbf16>
    %cst_15 = arith.constant dense<0.000000e+00> : vector<8x96xf32>
    %33 = tpu.matmul %30, %32, %cst_15 {dimension_numbers = #tpu.dot_dimension_numbers<[1], [0], [0], [1], [0, 0, 1, 1], [], []>} : vector<8x32xbf16>, vector<32x96xbf16>, vector<8x96xf32> -> vector<8x96xf32>
    %c0_16 = arith.constant 0 : index
    %c0_17 = arith.constant 0 : index
    %c0_18 = arith.constant 0 : index
    %34 = vector.load %arg6[%c0_16, %c0_17, %c0_18] : memref<1x1x96xf32, #tpu.memory_space<vmem>>, vector<1x1x96xf32>
    %35 = vector.shape_cast %34 : vector<1x1x96xf32> to vector<1x96xf32>
    %36 = vector.broadcast %35 : vector<1x96xf32> to vector<8x96xf32>
    %37 = arith.addf %33, %36 : vector<8x96xf32>
    %38 = vector.extract_strided_slice %37 {offsets = [0, 0], sizes = [8, 32], strides = [1, 1]} : vector<8x96xf32> to vector<8x32xf32>
    %39 = vector.extract_strided_slice %37 {offsets = [0, 32], sizes = [8, 32], strides = [1, 1]} : vector<8x96xf32> to vector<8x32xf32>
    %40 = vector.extract_strided_slice %37 {offsets = [0, 64], sizes = [8, 32], strides = [1, 1]} : vector<8x96xf32> to vector<8x32xf32>
    %41 = vector.shape_cast %38 : vector<8x32xf32> to vector<8x4x8xf32>
    %42 = tpu.transpose %41, [1, 0, 2] : vector<8x4x8xf32> -> vector<4x8x8xf32>
    %43 = vector.shape_cast %39 : vector<8x32xf32> to vector<8x4x8xf32>
    %44 = tpu.transpose %43, [1, 0, 2] : vector<8x4x8xf32> -> vector<4x8x8xf32>
    %45 = arith.truncf %44 : vector<4x8x8xf32> to vector<4x8x8xbf16>
    %46 = vector.shape_cast %40 : vector<8x32xf32> to vector<8x4x8xf32>
    %47 = tpu.transpose %46, [1, 0, 2] : vector<8x4x8xf32> -> vector<4x8x8xf32>
    %48 = arith.truncf %47 : vector<4x8x8xf32> to vector<4x8x8xbf16>
    %49 = tpu.iota {dimensions = array<i32: 1>} : vector<1x8x8xi32>
    %50 = tpu.iota {dimensions = array<i32: 2>} : vector<1x8x8xi32>
    %51 = arith.truncf %42 : vector<4x8x8xf32> to vector<4x8x8xbf16>
    %cst_19 = arith.constant 0xFF800000 : f32
    %52 = vector.broadcast %cst_19 : f32 to vector<4x8x1xf32>
    %cst_20 = arith.constant 0.000000e+00 : f32
    %53 = vector.broadcast %cst_20 : f32 to vector<4x8x1xf32>
    %cst_21 = arith.constant 0.000000e+00 : f32
    %54 = vector.broadcast %cst_21 : f32 to vector<4x8x8xf32>
    "tpu.trace_start"() <{level = 10 : i32, message = "hqd,hkd->hqk"}> : () -> ()
    %cst_22 = arith.constant dense<0.000000e+00> : vector<4x8x8xf32>
    %55 = tpu.matmul %51, %45, %cst_22 {dimension_numbers = #tpu.dot_dimension_numbers<[2], [2], [1], [1], [0, 0, 0, 1, 1, 1], [0], [0]>} : vector<4x8x8xbf16>, vector<4x8x8xbf16>, vector<4x8x8xf32> -> vector<4x8x8xf32>
    "tpu.trace_stop"() : () -> ()
    %cst_23 = arith.constant 0.353553385 : f32
    %56 = vector.broadcast %cst_23 : f32 to vector<4x8x8xf32>
    %57 = arith.mulf %55, %56 : vector<4x8x8xf32>
    %c0_i32_24 = arith.constant 0 : i32
    %58 = vector.broadcast %c0_i32_24 : i32 to vector<1x8x8xi32>
    %59 = arith.addi %58, %50 : vector<1x8x8xi32>
    %c0_i32_25 = arith.constant 0 : i32
    %60 = vector.broadcast %c0_i32_25 : i32 to vector<1x8x8xi32>
    %61 = arith.addi %60, %49 : vector<1x8x8xi32>
    %62 = arith.cmpi sle, %59, %61 : vector<1x8x8xi32>
    %cst_26 = arith.constant 0.000000e+00 : f32
    %63 = vector.shape_cast %62 : vector<1x8x8xi1> to vector<1x8x8xi1>
    %64 = vector.broadcast %63 : vector<1x8x8xi1> to vector<4x8x8xi1>
    %65 = vector.broadcast %cst_26 : f32 to vector<4x8x8xf32>
    %66 = arith.select %64, %57, %65 : vector<4x8x8xi1>, vector<4x8x8xf32>
    %cst_27 = arith.constant dense<0xFF800000> : vector<4x8xf32>
    %67 = vector.multi_reduction <maximumf>, %66, %cst_27 [2] : vector<4x8x8xf32> to vector<4x8xf32>
    %68 = vector.shape_cast %67 : vector<4x8xf32> to vector<4x8x1xf32>
    %69 = arith.maximumf %52, %68 : vector<4x8x1xf32>
    %70 = arith.subf %52, %69 : vector<4x8x1xf32>
    %71 = math.exp %70 : vector<4x8x1xf32>
    %72 = vector.broadcast %69 : vector<4x8x1xf32> to vector<4x8x8xf32>
    %73 = arith.subf %66, %72 : vector<4x8x8xf32>
    %74 = math.exp %73 : vector<4x8x8xf32>
    %75 = arith.mulf %71, %53 : vector<4x8x1xf32>
    %cst_28 = arith.constant dense<0.000000e+00> : vector<4x8xf32>
    %76 = vector.multi_reduction <add>, %74, %cst_28 [2] : vector<4x8x8xf32> to vector<4x8xf32>
    %77 = vector.shape_cast %76 : vector<4x8xf32> to vector<4x8x1xf32>
    %78 = arith.addf %75, %77 : vector<4x8x1xf32>
    %79 = vector.broadcast %71 : vector<4x8x1xf32> to vector<4x8x8xf32>
    %80 = arith.mulf %79, %54 : vector<4x8x8xf32>
    %81 = arith.truncf %74 : vector<4x8x8xf32> to vector<4x8x8xbf16>
    "tpu.trace_start"() <{level = 10 : i32, message = "hqk,hkd->hqd"}> : () -> ()
    %cst_29 = arith.constant dense<0.000000e+00> : vector<4x8x8xf32>
    %82 = tpu.matmul %81, %48, %cst_29 {dimension_numbers = #tpu.dot_dimension_numbers<[2], [1], [1], [2], [0, 0, 0, 1, 1, 2], [0], [0]>} : vector<4x8x8xbf16>, vector<4x8x8xbf16>, vector<4x8x8xf32> -> vector<4x8x8xf32>
    "tpu.trace_stop"() : () -> ()
    %83 = arith.addf %80, %82 : vector<4x8x8xf32>
    %84 = tpu.reciprocal %78 {approx = true} : vector<4x8x1xf32> -> vector<4x8x1xf32>
    %85 = vector.broadcast %84 : vector<4x8x1xf32> to vector<4x8x8xf32>
    %86 = arith.mulf %83, %85 : vector<4x8x8xf32>
    %87 = tpu.transpose %86, [1, 0, 2] : vector<4x8x8xf32> -> vector<8x4x8xf32>
    %88 = vector.shape_cast %87 : vector<8x4x8xf32> to vector<8x32xf32>
    %89 = arith.truncf %88 : vector<8x32xf32> to vector<8x32xbf16>
    %c0_30 = arith.constant 0 : index
    %c0_31 = arith.constant 0 : index
    %c0_32 = arith.constant 0 : index
    %90 = vector.load %arg7[%c0_30, %c0_31, %c0_32] : memref<1x32x32xbf16, #tpu.memory_space<vmem>>, vector<1x32x32xbf16>
    %91 = vector.shape_cast %90 : vector<1x32x32xbf16> to vector<32x32xbf16>
    %cst_33 = arith.constant dense<0.000000e+00> : vector<8x32xf32>
    %92 = tpu.matmul %89, %91, %cst_33 {dimension_numbers = #tpu.dot_dimension_numbers<[1], [0], [0], [1], [0, 0, 1, 1], [], []>} : vector<8x32xbf16>, vector<32x32xbf16>, vector<8x32xf32> -> vector<8x32xf32>
    %c0_34 = arith.constant 0 : index
    %c0_35 = arith.constant 0 : index
    %c0_36 = arith.constant 0 : index
    %93 = vector.load %arg8[%c0_34, %c0_35, %c0_36] : memref<1x1x32xf32, #tpu.memory_space<vmem>>, vector<1x1x32xf32>
    %94 = vector.shape_cast %93 : vector<1x1x32xf32> to vector<1x32xf32>
    %95 = vector.broadcast %94 : vector<1x32xf32> to vector<8x32xf32>
    %96 = arith.addf %92, %95 : vector<8x32xf32>
    %97 = arith.addf %3, %96 : vector<8x32xf32>
    %c0_37 = arith.constant 0 : index
    %c0_38 = arith.constant 0 : index
    %c0_39 = arith.constant 0 : index
    %98 = vector.load %arg9[%c0_37, %c0_38, %c0_39] : memref<1x1x32xf32, #tpu.memory_space<vmem>>, vector<1x1x32xf32>
    %99 = vector.shape_cast %98 : vector<1x1x32xf32> to vector<1x32xf32>
    %c0_40 = arith.constant 0 : index
    %c0_41 = arith.constant 0 : index
    %c0_42 = arith.constant 0 : index
    %100 = vector.load %arg10[%c0_40, %c0_41, %c0_42] : memref<1x1x32xf32, #tpu.memory_space<vmem>>, vector<1x1x32xf32>
    %101 = vector.shape_cast %100 : vector<1x1x32xf32> to vector<1x32xf32>
    %cst_43 = arith.constant dense<0.000000e+00> : vector<8xf32>
    %102 = vector.multi_reduction <add>, %97, %cst_43 [1] : vector<8x32xf32> to vector<8xf32>
    %103 = vector.shape_cast %102 : vector<8xf32> to vector<8x1xf32>
    %cst_44 = arith.constant 3.200000e+01 : f32
    %104 = vector.broadcast %cst_44 : f32 to vector<8x1xf32>
    %105 = arith.divf %103, %104 : vector<8x1xf32>
    %106 = vector.broadcast %105 : vector<8x1xf32> to vector<8x32xf32>
    %107 = arith.subf %97, %106 : vector<8x32xf32>
    %108 = arith.mulf %107, %107 : vector<8x32xf32>
    %cst_45 = arith.constant dense<0.000000e+00> : vector<8xf32>
    %109 = vector.multi_reduction <add>, %108, %cst_45 [1] : vector<8x32xf32> to vector<8xf32>
    %110 = vector.shape_cast %109 : vector<8xf32> to vector<8x1xf32>
    %cst_46 = arith.constant 3.200000e+01 : f32
    %111 = vector.broadcast %cst_46 : f32 to vector<8x1xf32>
    %112 = arith.divf %110, %111 : vector<8x1xf32>
    %113 = vector.broadcast %105 : vector<8x1xf32> to vector<8x32xf32>
    %114 = arith.subf %97, %113 : vector<8x32xf32>
    %cst_47 = arith.constant 9.99999974E-6 : f32
    %115 = vector.broadcast %cst_47 : f32 to vector<8x1xf32>
    %116 = arith.addf %112, %115 : vector<8x1xf32>
    %117 = math.rsqrt %116 : vector<8x1xf32>
    %118 = vector.broadcast %117 : vector<8x1xf32> to vector<8x32xf32>
    %119 = arith.mulf %114, %118 : vector<8x32xf32>
    %120 = vector.broadcast %99 : vector<1x32xf32> to vector<8x32xf32>
    %121 = arith.mulf %119, %120 : vector<8x32xf32>
    %122 = vector.broadcast %101 : vector<1x32xf32> to vector<8x32xf32>
    %123 = arith.addf %121, %122 : vector<8x32xf32>
    %124 = arith.truncf %123 : vector<8x32xf32> to vector<8x32xbf16>
    %c0_48 = arith.constant 0 : index
    %c0_49 = arith.constant 0 : index
    %c0_50 = arith.constant 0 : index
    %125 = vector.load %arg11[%c0_48, %c0_49, %c0_50] : memref<1x32x128xbf16, #tpu.memory_space<vmem>>, vector<1x32x128xbf16>
    %126 = vector.shape_cast %125 : vector<1x32x128xbf16> to vector<32x128xbf16>
    %cst_51 = arith.constant dense<0.000000e+00> : vector<8x128xf32>
    %127 = tpu.matmul %124, %126, %cst_51 {dimension_numbers = #tpu.dot_dimension_numbers<[1], [0], [0], [1], [0, 0, 1, 1], [], []>} : vector<8x32xbf16>, vector<32x128xbf16>, vector<8x128xf32> -> vector<8x128xf32>
    %c0_52 = arith.constant 0 : index
    %c0_53 = arith.constant 0 : index
    %c0_54 = arith.constant 0 : index
    %128 = vector.load %arg12[%c0_52, %c0_53, %c0_54] : memref<1x1x128xf32, #tpu.memory_space<vmem>>, vector<1x1x128xf32>
    %129 = vector.shape_cast %128 : vector<1x1x128xf32> to vector<1x128xf32>
    %130 = vector.broadcast %129 : vector<1x128xf32> to vector<8x128xf32>
    %131 = arith.addf %127, %130 : vector<8x128xf32>
    %cst_55 = arith.constant 5.000000e-01 : f32
    %132 = vector.broadcast %cst_55 : f32 to vector<8x128xf32>
    %133 = arith.mulf %132, %131 : vector<8x128xf32>
    %cst_56 = arith.constant 0.707106769 : f32
    %134 = vector.broadcast %cst_56 : f32 to vector<8x128xf32>
    %135 = arith.mulf %131, %134 : vector<8x128xf32>
    %cst_57 = arith.constant 0.000000e+00 : f32
    %136 = vector.broadcast %cst_57 : f32 to vector<8x128xf32>
    %137 = arith.cmpf oge, %135, %136 : vector<8x128xf32>
    %cst_58 = arith.constant 1.000000e+00 : f32
    %cst_59 = arith.constant -1.000000e+00 : f32
    %138 = vector.broadcast %cst_58 : f32 to vector<8x128xf32>
    %139 = vector.broadcast %cst_59 : f32 to vector<8x128xf32>
    %140 = arith.select %137, %138, %139 : vector<8x128xi1>, vector<8x128xf32>
    %141 = math.absf %135 : vector<8x128xf32>
    %cst_60 = arith.constant 0.327591091 : f32
    %142 = vector.broadcast %cst_60 : f32 to vector<8x128xf32>
    %143 = arith.mulf %142, %141 : vector<8x128xf32>
    %cst_61 = arith.constant 1.000000e+00 : f32
    %144 = vector.broadcast %cst_61 : f32 to vector<8x128xf32>
    %145 = arith.addf %144, %143 : vector<8x128xf32>
    %cst_62 = arith.constant 1.000000e+00 : f32
    %146 = vector.broadcast %cst_62 : f32 to vector<8x128xf32>
    %147 = arith.divf %146, %145 : vector<8x128xf32>
    %cst_63 = arith.constant 1.06140542 : f32
    %148 = vector.broadcast %cst_63 : f32 to vector<8x128xf32>
    %149 = arith.mulf %148, %147 : vector<8x128xf32>
    %cst_64 = arith.constant -1.45315206 : f32
    %150 = vector.broadcast %cst_64 : f32 to vector<8x128xf32>
    %151 = arith.addf %149, %150 : vector<8x128xf32>
    %152 = arith.mulf %151, %147 : vector<8x128xf32>
    %cst_65 = arith.constant 1.42141378 : f32
    %153 = vector.broadcast %cst_65 : f32 to vector<8x128xf32>
    %154 = arith.addf %152, %153 : vector<8x128xf32>
    %155 = arith.mulf %154, %147 : vector<8x128xf32>
    %cst_66 = arith.constant -0.284496725 : f32
    %156 = vector.broadcast %cst_66 : f32 to vector<8x128xf32>
    %157 = arith.addf %155, %156 : vector<8x128xf32>
    %158 = arith.mulf %157, %147 : vector<8x128xf32>
    %cst_67 = arith.constant 0.254829586 : f32
    %159 = vector.broadcast %cst_67 : f32 to vector<8x128xf32>
    %160 = arith.addf %158, %159 : vector<8x128xf32>
    %161 = arith.mulf %160, %147 : vector<8x128xf32>
    %cst_68 = arith.constant 0.000000e+00 : f32
    %162 = vector.broadcast %cst_68 : f32 to vector<8x128xf32>
    %163 = arith.subf %162, %141 : vector<8x128xf32>
    %164 = arith.mulf %163, %141 : vector<8x128xf32>
    %165 = math.exp %164 : vector<8x128xf32>
    %166 = arith.mulf %161, %165 : vector<8x128xf32>
    %cst_69 = arith.constant 1.000000e+00 : f32
    %167 = vector.broadcast %cst_69 : f32 to vector<8x128xf32>
    %168 = arith.subf %167, %166 : vector<8x128xf32>
    %169 = arith.mulf %140, %168 : vector<8x128xf32>
    %cst_70 = arith.constant 1.000000e+00 : f32
    %170 = vector.broadcast %cst_70 : f32 to vector<8x128xf32>
    %171 = arith.addf %170, %169 : vector<8x128xf32>
    %172 = arith.mulf %133, %171 : vector<8x128xf32>
    %173 = arith.truncf %172 : vector<8x128xf32> to vector<8x128xbf16>
    %c0_71 = arith.constant 0 : index
    %c0_72 = arith.constant 0 : index
    %c0_73 = arith.constant 0 : index
    %174 = vector.load %arg13[%c0_71, %c0_72, %c0_73] : memref<1x128x32xbf16, #tpu.memory_space<vmem>>, vector<1x128x32xbf16>
    %175 = vector.shape_cast %174 : vector<1x128x32xbf16> to vector<128x32xbf16>
    %cst_74 = arith.constant dense<0.000000e+00> : vector<8x32xf32>
    %176 = tpu.matmul %173, %175, %cst_74 {dimension_numbers = #tpu.dot_dimension_numbers<[1], [0], [0], [1], [0, 0, 1, 1], [], []>} : vector<8x128xbf16>, vector<128x32xbf16>, vector<8x32xf32> -> vector<8x32xf32>
    %c0_75 = arith.constant 0 : index
    %c0_76 = arith.constant 0 : index
    %c0_77 = arith.constant 0 : index
    %177 = vector.load %arg14[%c0_75, %c0_76, %c0_77] : memref<1x1x32xf32, #tpu.memory_space<vmem>>, vector<1x1x32xf32>
    %178 = vector.shape_cast %177 : vector<1x1x32xf32> to vector<1x32xf32>
    %179 = vector.broadcast %178 : vector<1x32xf32> to vector<8x32xf32>
    %180 = arith.addf %176, %179 : vector<8x32xf32>
    %181 = arith.addf %97, %180 : vector<8x32xf32>
    %c0_78 = arith.constant 0 : index
    %c0_79 = arith.constant 0 : index
    %182 = vector.load %arg18[%c0_78, %c0_79] : memref<8x32xf32, #tpu.memory_space<vmem>>, vector<8x32xf32>
    tpu.vector_store %arg18[%c0_78, %c0_79], %181 {strides = array<i32>} : memref<8x32xf32, #tpu.memory_space<vmem>>, vector<8x32xf32>,
    %c1_i32 = arith.constant 1 : i32
    %183 = arith.cmpi eq, %arg1, %c1_i32 : i32
    %184 = arith.extui %183 : i1 to i32
    %c0_i32_80 = arith.constant 0 : i32
    %185 = arith.cmpi ne, %184, %c0_i32_80 : i32
    scf.if %185 {
      %c0_81 = arith.constant 0 : index
      %c0_82 = arith.constant 0 : index
      %186 = vector.load %arg15[%c0_81, %c0_82] : memref<1x32xf32, #tpu.memory_space<vmem>>, vector<1x32xf32>
      %c0_83 = arith.constant 0 : index
      %c0_84 = arith.constant 0 : index
      %187 = vector.load %arg16[%c0_83, %c0_84] : memref<1x32xf32, #tpu.memory_space<vmem>>, vector<1x32xf32>
      %cst_85 = arith.constant dense<0.000000e+00> : vector<8xf32>
      %188 = vector.multi_reduction <add>, %181, %cst_85 [1] : vector<8x32xf32> to vector<8xf32>
      %189 = vector.shape_cast %188 : vector<8xf32> to vector<8x1xf32>
      %cst_86 = arith.constant 3.200000e+01 : f32
      %190 = vector.broadcast %cst_86 : f32 to vector<8x1xf32>
      %191 = arith.divf %189, %190 : vector<8x1xf32>
      %192 = vector.broadcast %191 : vector<8x1xf32> to vector<8x32xf32>
      %193 = arith.subf %181, %192 : vector<8x32xf32>
      %194 = arith.mulf %193, %193 : vector<8x32xf32>
      %cst_87 = arith.constant dense<0.000000e+00> : vector<8xf32>
      %195 = vector.multi_reduction <add>, %194, %cst_87 [1] : vector<8x32xf32> to vector<8xf32>
      %196 = vector.shape_cast %195 : vector<8xf32> to vector<8x1xf32>
      %cst_88 = arith.constant 3.200000e+01 : f32
      %197 = vector.broadcast %cst_88 : f32 to vector<8x1xf32>
      %198 = arith.divf %196, %197 : vector<8x1xf32>
      %199 = vector.broadcast %191 : vector<8x1xf32> to vector<8x32xf32>
      %200 = arith.subf %181, %199 : vector<8x32xf32>
      %cst_89 = arith.constant 9.99999974E-6 : f32
      %201 = vector.broadcast %cst_89 : f32 to vector<8x1xf32>
      %202 = arith.addf %198, %201 : vector<8x1xf32>
      %203 = math.rsqrt %202 : vector<8x1xf32>
      %204 = vector.broadcast %203 : vector<8x1xf32> to vector<8x32xf32>
      %205 = arith.mulf %200, %204 : vector<8x32xf32>
      %206 = vector.broadcast %186 : vector<1x32xf32> to vector<8x32xf32>
      %207 = arith.mulf %205, %206 : vector<8x32xf32>
      %208 = vector.broadcast %187 : vector<1x32xf32> to vector<8x32xf32>
      %209 = arith.addf %207, %208 : vector<8x32xf32>
      %c0_90 = arith.constant 0 : index
      %c0_91 = arith.constant 0 : index
      %c0_92 = arith.constant 0 : index
      %210 = vector.load %arg17[%c0_90, %c0_91, %c0_92] : memref<1x8x32xf32, #tpu.memory_space<vmem>>, vector<1x8x32xf32>
      %211 = vector.shape_cast %210 : vector<1x8x32xf32> to vector<8x32xf32>
      %212 = vector.shape_cast %209 : vector<8x32xf32> to vector<1x8x32xf32>
      tpu.vector_store %arg17[%c0_90, %c0_91, %c0_92], %212 {strides = array<i32>} : memref<1x8x32xf32, #tpu.memory_space<vmem>>, vector<1x8x32xf32>,
    } else {
    }
    return
  }
  func.func @transform_0(%arg0: i32, %arg1: i32) -> (i32, i32, i32) {
    %c0_i32 = arith.constant 0 : i32
    %c0_i32_0 = arith.constant 0 : i32
    %c0_i32_1 = arith.constant 0 : i32
    return %arg0, %c0_i32, %c0_i32_0 : i32, i32, i32
  }
  func.func @transform_1(%arg0: i32, %arg1: i32) -> (i32, i32, i32) {
    %c0_i32 = arith.constant 0 : i32
    %c0_i32_0 = arith.constant 0 : i32
    %c0_i32_1 = arith.constant 0 : i32
    return %arg1, %c0_i32, %c0_i32_0 : i32, i32, i32
  }
  func.func @transform_2(%arg0: i32, %arg1: i32) -> (i32, i32, i32) {
    %c0_i32 = arith.constant 0 : i32
    %c0_i32_0 = arith.constant 0 : i32
    %c0_i32_1 = arith.constant 0 : i32
    return %arg1, %c0_i32, %c0_i32_0 : i32, i32, i32
  }
  func.func @transform_3(%arg0: i32, %arg1: i32) -> (i32, i32, i32) {
    %c0_i32 = arith.constant 0 : i32
    %c0_i32_0 = arith.constant 0 : i32
    %c0_i32_1 = arith.constant 0 : i32
    return %arg1, %c0_i32, %c0_i32_0 : i32, i32, i32
  }
  func.func @transform_4(%arg0: i32, %arg1: i32) -> (i32, i32, i32) {
    %c0_i32 = arith.constant 0 : i32
    %c0_i32_0 = arith.constant 0 : i32
    %c0_i32_1 = arith.constant 0 : i32
    return %arg1, %c0_i32, %c0_i32_0 : i32, i32, i32
  }
  func.func @transform_5(%arg0: i32, %arg1: i32) -> (i32, i32, i32) {
    %c0_i32 = arith.constant 0 : i32
    %c0_i32_0 = arith.constant 0 : i32
    %c0_i32_1 = arith.constant 0 : i32
    return %arg1, %c0_i32, %c0_i32_0 : i32, i32, i32
  }
  func.func @transform_6(%arg0: i32, %arg1: i32) -> (i32, i32, i32) {
    %c0_i32 = arith.constant 0 : i32
    %c0_i32_0 = arith.constant 0 : i32
    %c0_i32_1 = arith.constant 0 : i32
    return %arg1, %c0_i32, %c0_i32_0 : i32, i32, i32
  }
  func.func @transform_7(%arg0: i32, %arg1: i32) -> (i32, i32, i32) {
    %c0_i32 = arith.constant 0 : i32
    %c0_i32_0 = arith.constant 0 : i32
    %c0_i32_1 = arith.constant 0 : i32
    return %arg1, %c0_i32, %c0_i32_0 : i32, i32, i32
  }
  func.func @transform_8(%arg0: i32, %arg1: i32) -> (i32, i32, i32) {
    %c0_i32 = arith.constant 0 : i32
    %c0_i32_0 = arith.constant 0 : i32
    %c0_i32_1 = arith.constant 0 : i32
    return %arg1, %c0_i32, %c0_i32_0 : i32, i32, i32
  }
  func.func @transform_9(%arg0: i32, %arg1: i32) -> (i32, i32, i32) {
    %c0_i32 = arith.constant 0 : i32
    %c0_i32_0 = arith.constant 0 : i32
    %c0_i32_1 = arith.constant 0 : i32
    return %arg1, %c0_i32, %c0_i32_0 : i32, i32, i32
  }
  func.func @transform_10(%arg0: i32, %arg1: i32) -> (i32, i32, i32) {
    %c0_i32 = arith.constant 0 : i32
    %c0_i32_0 = arith.constant 0 : i32
    %c0_i32_1 = arith.constant 0 : i32
    return %arg1, %c0_i32, %c0_i32_0 : i32, i32, i32
  }
  func.func @transform_11(%arg0: i32, %arg1: i32) -> (i32, i32, i32) {
    %c0_i32 = arith.constant 0 : i32
    %c0_i32_0 = arith.constant 0 : i32
    %c0_i32_1 = arith.constant 0 : i32
    return %arg1, %c0_i32, %c0_i32_0 : i32, i32, i32
  }
  func.func @transform_12(%arg0: i32, %arg1: i32) -> (i32, i32, i32) {
    %c0_i32 = arith.constant 0 : i32
    %c0_i32_0 = arith.constant 0 : i32
    %c0_i32_1 = arith.constant 0 : i32
    return %arg1, %c0_i32, %c0_i32_0 : i32, i32, i32
  }
  func.func @transform_13(%arg0: i32, %arg1: i32) -> (i32, i32) {
    %c0_i32 = arith.constant 0 : i32
    %c0_i32_0 = arith.constant 0 : i32
    %c0_i32_1 = arith.constant 0 : i32
    return %c0_i32, %c0_i32_0 : i32, i32
  }
  func.func @transform_14(%arg0: i32, %arg1: i32) -> (i32, i32) {
    %c0_i32 = arith.constant 0 : i32
    %c0_i32_0 = arith.constant 0 : i32
    %c0_i32_1 = arith.constant 0 : i32
    return %c0_i32, %c0_i32_0 : i32, i32
  }
  func.func @transform_15(%arg0: i32, %arg1: i32) -> (i32, i32, i32) {
    %c0_i32 = arith.constant 0 : i32
    %c0_i32_0 = arith.constant 0 : i32
    %c0_i32_1 = arith.constant 0 : i32
    return %arg0, %c0_i32, %c0_i32_0 : i32, i32, i32
  }
}

</mosaic_0001>

<llo_original>
// kernel: encoder_forward.1
$region0: #{encoder_forward.1}
  #allocation0 [shape = 'u32[]', space=smem, size = 0x4, offset = 0x4, fixed_abs, tag = 'smem constant byte address 0x4 - core index']
  #allocation1 [shape = 'u32[144,128]{1,0:T(1,128)}', space=vmem, size = 0x12000, scoped, tag = 'internal scratch']
  #allocation2 [shape = 'f32[8,32]{1,0:T(8,128)}', space=vmem, size = 0x1000, scoped, tag = 'scratch operand']
  %s0 = inlined_call_operand.vmem [shape: f32[2,8,32], index: 0, kind: input, shape index: {}]
  %s1 = inlined_call_operand.vmem [shape: f32[2,1,32], index: 1, kind: input, shape index: {}]
  %s2 = inlined_call_operand.vmem [shape: f32[2,1,32], index: 2, kind: input, shape index: {}]
  %s3 = inlined_call_operand.vmem [shape: bf16[2,32,96], index: 3, kind: input, shape index: {}]
  %s4 = inlined_call_operand.vmem [shape: f32[2,1,96], index: 4, kind: input, shape index: {}]
  %s5 = inlined_call_operand.vmem [shape: bf16[2,32,32], index: 5, kind: input, shape index: {}]
  %s6 = inlined_call_operand.vmem [shape: f32[2,1,32], index: 6, kind: input, shape index: {}]
  %s7 = inlined_call_operand.vmem [shape: f32[2,1,32], index: 7, kind: input, shape index: {}]
  %s8 = inlined_call_operand.vmem [shape: f32[2,1,32], index: 8, kind: input, shape index: {}]
  %s9 = inlined_call_operand.vmem [shape: bf16[2,32,128], index: 9, kind: input, shape index: {}]
  %s10 = inlined_call_operand.vmem [shape: f32[2,1,128], index: 10, kind: input, shape index: {}]
  %s11 = inlined_call_operand.vmem [shape: bf16[2,128,32], index: 11, kind: input, shape index: {}]
  %s12 = inlined_call_operand.vmem [shape: f32[2,1,32], index: 12, kind: input, shape index: {}]
  %s13 = inlined_call_operand.vmem [shape: f32[1,32], index: 13, kind: input, shape index: {}]
  %s14 = inlined_call_operand.vmem [shape: f32[1,32], index: 14, kind: input, shape index: {}]
  %s15 = inlined_call_operand.hbm [shape: f32[2,8,32], index: 15, kind: output, shape index: {}]
  %s16 = sld [smem:[#allocation0]]
  $region101: #{encoder_forward.1} parent=0
    _
  %s18 = ssub.s32 1, %s16
  %s19 = scalar_select 0, %s18, %s16
  $region1: #{encoder_forward.1} parent=0
    #allocation3 [shape = 'u8[8192]{0}', space=vmem, size = 0x2000, scoped, tag = 'output window, operand 0']
    #allocation4 [shape = 's32[2]{0}', space=sflag, size = 0x8, scoped, tag = 'scoped memory for encoder_forward.1']
    %20 = vsyncpa [#allocation4], 0
    %s21 = scalar_lea.sflag [#allocation4], 1
    %22 = vsyncpa %s21, 0
    loop: start=0, step=1, limit=6
    $region2: #{encoder_forward.1} parent=1 // loop_pre_header
      _
    $region3: #{encoder_forward.1} parent=1 // loop_header
      %s24 = sphi 0, %s28
      %p25 = scmp.ge.s32.totalorder %s24, 6
      %s31 = sphi 0, %s43
      %s32 = sphi 0, %s39
      %s33 = sphi 0, %s31
      %s34 = sphi 0, %s32
      %s35 = sphi 0, %s33
      %s36 = sphi 0, %s34
      %s46 = sphi 0, %s48
      %s49 = sphi 0, %s46
      %s50 = sphi 0, %s49
      %s66 = sphi 0, %s50
      %s72 = sphi 0, %s74
      %s75 = sphi 0, %s72
      %s76 = sphi 0, %s75
      %s92 = sphi 0, %s76
      %s98 = sphi 0, %s100
      %s101 = sphi 0, %s98
      %s102 = sphi 0, %s101
      %s118 = sphi 0, %s102
      %s124 = sphi 0, %s126
      %s127 = sphi 0, %s124
      %s128 = sphi 0, %s127
      %s144 = sphi 0, %s128
      %s150 = sphi 0, %s152
      %s153 = sphi 0, %s150
      %s154 = sphi 0, %s153
      %s170 = sphi 0, %s154
      %s176 = sphi 0, %s178
      %s179 = sphi 0, %s176
      %s180 = sphi 0, %s179
      %s196 = sphi 0, %s180
      %s202 = sphi 0, %s204
      %s205 = sphi 0, %s202
      %s206 = sphi 0, %s205
      %s222 = sphi 0, %s206
      %s228 = sphi 0, %s230
      %s231 = sphi 0, %s228
      %s232 = sphi 0, %s231
      %s248 = sphi 0, %s232
      %s254 = sphi 0, %s256
      %s257 = sphi 0, %s254
      %s258 = sphi 0, %s257
      %s274 = sphi 0, %s258
      %s280 = sphi 0, %s282
      %s283 = sphi 0, %s280
      %s284 = sphi 0, %s283
      %s300 = sphi 0, %s284
      %s306 = sphi 0, %s308
      %s309 = sphi 0, %s306
      %s310 = sphi 0, %s309
      %s326 = sphi 0, %s310
      %s332 = sphi 0, %s334
      %s335 = sphi 0, %s332
      %s336 = sphi 0, %s335
      %s352 = sphi 0, %s336
      %s358 = sphi 0, %s360
      %s361 = sphi 0, %s358
      %s362 = sphi 0, %s361
      %s378 = sphi 0, %s362
      %s382 = sphi 0, %s382
      %s384 = sphi 0, %s382
      %s385 = sphi 0, %s384
      %s399 = sphi 0, %s385
      %s403 = sphi 0, %s403
      %s405 = sphi 0, %s403
      %s406 = sphi 0, %s405
      %s420 = sphi 0, %s406
      %s426 = sphi 0, %s428
      %s429 = sphi 0, %s426
      %s430 = sphi 0, %s429
      %s446 = sphi 0, %s430
    $region4: #{encoder_forward.1} parent=1 // loop_header_branch
      %27 = sbr.rel (%p25) target = $region8
    $region5: #{encoder_forward.1} parent=1 // loop_body
      %s29 = ssub.s32 %s24, 1
      %s30 = ssub.s32 %s24, 2
      %s37 = sadd.s32 1, %s32
      %p38 = scmp.ge.s32.totalorder %s37, 2
      %s39 = scalar_select %p38, 0, %s37
      %s40 = sadd.s32 1, %s31
      %s41 = scalar_select %p38, %s40, %s31
      %p42 = scmp.ge.s32.totalorder %s41, 2
      %s43 = scalar_select %p42, 0, %s41
      %s44 = ssub.s32 %s31, %s43
      %p45 = scmp.eq.s32.totalorder %s44, 0
      %s47 = sadd.s32 %s46, 1
      %s48 = scalar_select %p45, %s46, %s47
      %p51 = pneg %p45
      %p52 = scmp.eq.s32.totalorder %s24, 3
      %p53 = por %p51, %p52
      %p54 = scmp.ne.s32.totalorder %s46, %s49
      %p55 = scmp.eq.s32.totalorder %s24, 0
      %p56 = por %p54, %p55
      %p57 = scmp.ne.s32.totalorder %s46, %s49
      %p58 = scmp.eq.s32.totalorder %s29, 3
      %p59 = por %p57, %p58
      %p60 = scmp.ne.s32.totalorder %s49, %s50
      %p61 = scmp.eq.s32.totalorder %s29, 0
      %p62 = por %p60, %p61
      %p63 = scmp.ne.s32.totalorder %s49, %s50
      %p64 = scmp.eq.s32.totalorder %s30, 3
      %p65 = por %p63, %p64
      %p67 = scmp.ne.s32.totalorder %s50, %s66
      %p68 = scmp.eq.s32.totalorder %s30, 0
      %p69 = por %p67, %p68
      %s70 = ssub.s32 %s32, %s39
      %p71 = scmp.eq.s32.totalorder %s70, 0
      %s73 = sadd.s32 %s72, 1
      %s74 = scalar_select %p71, %s72, %s73
      %p77 = pneg %p71
      %p78 = scmp.eq.s32.totalorder %s24, 3
      %p79 = por %p77, %p78
      %p80 = scmp.ne.s32.totalorder %s72, %s75
      %p81 = scmp.eq.s32.totalorder %s24, 0
      %p82 = por %p80, %p81
      %p83 = scmp.ne.s32.totalorder %s72, %s75
      %p84 = scmp.eq.s32.totalorder %s29, 3
      %p85 = por %p83, %p84
      %p86 = scmp.ne.s32.totalorder %s75, %s76
      %p87 = scmp.eq.s32.totalorder %s29, 0
      %p88 = por %p86, %p87
      %p89 = scmp.ne.s32.totalorder %s75, %s76
      %p90 = scmp.eq.s32.totalorder %s30, 3
      %p91 = por %p89, %p90
      %p93 = scmp.ne.s32.totalorder %s76, %s92
      %p94 = scmp.eq.s32.totalorder %s30, 0
      %p95 = por %p93, %p94
      %s96 = ssub.s32 %s32, %s39
      %p97 = scmp.eq.s32.totalorder %s96, 0
      %s99 = sadd.s32 %s98, 1
      %s100 = scalar_select %p97, %s98, %s99
      %p103 = pneg %p97
      %p104 = scmp.eq.s32.totalorder %s24, 3
      %p105 = por %p103, %p104
      %p106 = scmp.ne.s32.totalorder %s98, %s101
      %p107 = scmp.eq.s32.totalorder %s24, 0
      %p108 = por %p106, %p107
      %p109 = scmp.ne.s32.totalorder %s98, %s101
      %p110 = scmp.eq.s32.totalorder %s29, 3
      %p111 = por %p109, %p110
      %p112 = scmp.ne.s32.totalorder %s101, %s102
      %p113 = scmp.eq.s32.totalorder %s29, 0
      %p114 = por %p112, %p113
      %p115 = scmp.ne.s32.totalorder %s101, %s102
      %p116 = scmp.eq.s32.totalorder %s30, 3
      %p117 = por %p115, %p116
      %p119 = scmp.ne.s32.totalorder %s102, %s118
      %p120 = scmp.eq.s32.totalorder %s30, 0
      %p121 = por %p119, %p120
      %s122 = ssub.s32 %s32, %s39
      %p123 = scmp.eq.s32.totalorder %s122, 0
      %s125 = sadd.s32 %s124, 1
      %s126 = scalar_select %p123, %s124, %s125
      %p129 = pneg %p123
      %p130 = scmp.eq.s32.totalorder %s24, 3
      %p131 = por %p129, %p130
      %p132 = scmp.ne.s32.totalorder %s124, %s127
      %p133 = scmp.eq.s32.totalorder %s24, 0
      %p134 = por %p132, %p133
      %p135 = scmp.ne.s32.totalorder %s124, %s127
      %p136 = scmp.eq.s32.totalorder %s29, 3
      %p137 = por %p135, %p136
      %p138 = scmp.ne.s32.totalorder %s127, %s128
      %p139 = scmp.eq.s32.totalorder %s29, 0
      %p140 = por %p138, %p139
      %p141 = scmp.ne.s32.totalorder %s127, %s128
      %p142 = scmp.eq.s32.totalorder %s30, 3
      %p143 = por %p141, %p142
      %p145 = scmp.ne.s32.totalorder %s128, %s144
      %p146 = scmp.eq.s32.totalorder %s30, 0
      %p147 = por %p145, %p146
      %s148 = ssub.s32 %s32, %s39
      %p149 = scmp.eq.s32.totalorder %s148, 0
      %s151 = sadd.s32 %s150, 1
      %s152 = scalar_select %p149, %s150, %s151
      %p155 = pneg %p149
      %p156 = scmp.eq.s32.totalorder %s24, 3
      %p157 = por %p155, %p156
      %p158 = scmp.ne.s32.totalorder %s150, %s153
      %p159 = scmp.eq.s32.totalorder %s24, 0
      %p160 = por %p158, %p159
      %p161 = scmp.ne.s32.totalorder %s150, %s153
      %p162 = scmp.eq.s32.totalorder %s29, 3
      %p163 = por %p161, %p162
      %p164 = scmp.ne.s32.totalorder %s153, %s154
      %p165 = scmp.eq.s32.totalorder %s29, 0
      %p166 = por %p164, %p165
      %p167 = scmp.ne.s32.totalorder %s153, %s154
      %p168 = scmp.eq.s32.totalorder %s30, 3
      %p169 = por %p167, %p168
      %p171 = scmp.ne.s32.totalorder %s154, %s170
      %p172 = scmp.eq.s32.totalorder %s30, 0
      %p173 = por %p171, %p172
      %s174 = ssub.s32 %s32, %s39
      %p175 = scmp.eq.s32.totalorder %s174, 0
      %s177 = sadd.s32 %s176, 1
      %s178 = scalar_select %p175, %s176, %s177
      %p181 = pneg %p175
      %p182 = scmp.eq.s32.totalorder %s24, 3
      %p183 = por %p181, %p182
      %p184 = scmp.ne.s32.totalorder %s176, %s179
      %p185 = scmp.eq.s32.totalorder %s24, 0
      %p186 = por %p184, %p185
      %p187 = scmp.ne.s32.totalorder %s176, %s179
      %p188 = scmp.eq.s32.totalorder %s29, 3
      %p189 = por %p187, %p188
      %p190 = scmp.ne.s32.totalorder %s179, %s180
      %p191 = scmp.eq.s32.totalorder %s29, 0
      %p192 = por %p190, %p191
      %p193 = scmp.ne.s32.totalorder %s179, %s180
      %p194 = scmp.eq.s32.totalorder %s30, 3
      %p195 = por %p193, %p194
      %p197 = scmp.ne.s32.totalorder %s180, %s196
      %p198 = scmp.eq.s32.totalorder %s30, 0
      %p199 = por %p197, %p198
      %s200 = ssub.s32 %s32, %s39
      %p201 = scmp.eq.s32.totalorder %s200, 0
      %s203 = sadd.s32 %s202, 1
      %s204 = scalar_select %p201, %s202, %s203
      %p207 = pneg %p201
      %p208 = scmp.eq.s32.totalorder %s24, 3
      %p209 = por %p207, %p208
      %p210 = scmp.ne.s32.totalorder %s202, %s205
      %p211 = scmp.eq.s32.totalorder %s24, 0
      %p212 = por %p210, %p211
      %p213 = scmp.ne.s32.totalorder %s202, %s205
      %p214 = scmp.eq.s32.totalorder %s29, 3
      %p215 = por %p213, %p214
      %p216 = scmp.ne.s32.totalorder %s205, %s206
      %p217 = scmp.eq.s32.totalorder %s29, 0
      %p218 = por %p216, %p217
      %p219 = scmp.ne.s32.totalorder %s205, %s206
      %p220 = scmp.eq.s32.totalorder %s30, 3
      %p221 = por %p219, %p220
      %p223 = scmp.ne.s32.totalorder %s206, %s222
      %p224 = scmp.eq.s32.totalorder %s30, 0
      %p225 = por %p223, %p224
      %s226 = ssub.s32 %s32, %s39
      %p227 = scmp.eq.s32.totalorder %s226, 0
      %s229 = sadd.s32 %s228, 1
      %s230 = scalar_select %p227, %s228, %s229
      %p233 = pneg %p227
      %p234 = scmp.eq.s32.totalorder %s24, 3
      %p235 = por %p233, %p234
      %p236 = scmp.ne.s32.totalorder %s228, %s231
      %p237 = scmp.eq.s32.totalorder %s24, 0
      %p238 = por %p236, %p237
      %p239 = scmp.ne.s32.totalorder %s228, %s231
      %p240 = scmp.eq.s32.totalorder %s29, 3
      %p241 = por %p239, %p240
      %p242 = scmp.ne.s32.totalorder %s231, %s232
      %p243 = scmp.eq.s32.totalorder %s29, 0
      %p244 = por %p242, %p243
      %p245 = scmp.ne.s32.totalorder %s231, %s232
      %p246 = scmp.eq.s32.totalorder %s30, 3
      %p247 = por %p245, %p246
      %p249 = scmp.ne.s32.totalorder %s232, %s248
      %p250 = scmp.eq.s32.totalorder %s30, 0
      %p251 = por %p249, %p250
      %s252 = ssub.s32 %s32, %s39
      %p253 = scmp.eq.s32.totalorder %s252, 0
      %s255 = sadd.s32 %s254, 1
      %s256 = scalar_select %p253, %s254, %s255
      %p259 = pneg %p253
      %p260 = scmp.eq.s32.totalorder %s24, 3
      %p261 = por %p259, %p260
      %p262 = scmp.ne.s32.totalorder %s254, %s257
      %p263 = scmp.eq.s32.totalorder %s24, 0
      %p264 = por %p262, %p263
      %p265 = scmp.ne.s32.totalorder %s254, %s257
      %p266 = scmp.eq.s32.totalorder %s29, 3
      %p267 = por %p265, %p266
      %p268 = scmp.ne.s32.totalorder %s257, %s258
      %p269 = scmp.eq.s32.totalorder %s29, 0
      %p270 = por %p268, %p269
      %p271 = scmp.ne.s32.totalorder %s257, %s258
      %p272 = scmp.eq.s32.totalorder %s30, 3
      %p273 = por %p271, %p272
      %p275 = scmp.ne.s32.totalorder %s258, %s274
      %p276 = scmp.eq.s32.totalorder %s30, 0
      %p277 = por %p275, %p276
      %s278 = ssub.s32 %s32, %s39
      %p279 = scmp.eq.s32.totalorder %s278, 0
      %s281 = sadd.s32 %s280, 1
      %s282 = scalar_select %p279, %s280, %s281
      %p285 = pneg %p279
      %p286 = scmp.eq.s32.totalorder %s24, 3
      %p287 = por %p285, %p286
      %p288 = scmp.ne.s32.totalorder %s280, %s283
      %p289 = scmp.eq.s32.totalorder %s24, 0
      %p290 = por %p288, %p289
      %p291 = scmp.ne.s32.totalorder %s280, %s283
      %p292 = scmp.eq.s32.totalorder %s29, 3
      %p293 = por %p291, %p292
      %p294 = scmp.ne.s32.totalorder %s283, %s284
      %p295 = scmp.eq.s32.totalorder %s29, 0
      %p296 = por %p294, %p295
      %p297 = scmp.ne.s32.totalorder %s283, %s284
      %p298 = scmp.eq.s32.totalorder %s30, 3
      %p299 = por %p297, %p298
      %p301 = scmp.ne.s32.totalorder %s284, %s300
      %p302 = scmp.eq.s32.totalorder %s30, 0
      %p303 = por %p301, %p302
      %s304 = ssub.s32 %s32, %s39
      %p305 = scmp.eq.s32.totalorder %s304, 0
      %s307 = sadd.s32 %s306, 1
      %s308 = scalar_select %p305, %s306, %s307
      %p311 = pneg %p305
      %p312 = scmp.eq.s32.totalorder %s24, 3
      %p313 = por %p311, %p312
      %p314 = scmp.ne.s32.totalorder %s306, %s309
      %p315 = scmp.eq.s32.totalorder %s24, 0
      %p316 = por %p314, %p315
      %p317 = scmp.ne.s32.totalorder %s306, %s309
      %p318 = scmp.eq.s32.totalorder %s29, 3
      %p319 = por %p317, %p318
      %p320 = scmp.ne.s32.totalorder %s309, %s310
      %p321 = scmp.eq.s32.totalorder %s29, 0
      %p322 = por %p320, %p321
      %p323 = scmp.ne.s32.totalorder %s309, %s310
      %p324 = scmp.eq.s32.totalorder %s30, 3
      %p325 = por %p323, %p324
      %p327 = scmp.ne.s32.totalorder %s310, %s326
      %p328 = scmp.eq.s32.totalorder %s30, 0
      %p329 = por %p327, %p328
      %s330 = ssub.s32 %s32, %s39
      %p331 = scmp.eq.s32.totalorder %s330, 0
      %s333 = sadd.s32 %s332, 1
      %s334 = scalar_select %p331, %s332, %s333
      %p337 = pneg %p331
      %p338 = scmp.eq.s32.totalorder %s24, 3
      %p339 = por %p337, %p338
      %p340 = scmp.ne.s32.totalorder %s332, %s335
      %p341 = scmp.eq.s32.totalorder %s24, 0
      %p342 = por %p340, %p341
      %p343 = scmp.ne.s32.totalorder %s332, %s335
      %p344 = scmp.eq.s32.totalorder %s29, 3
      %p345 = por %p343, %p344
      %p346 = scmp.ne.s32.totalorder %s335, %s336
      %p347 = scmp.eq.s32.totalorder %s29, 0
      %p348 = por %p346, %p347
      %p349 = scmp.ne.s32.totalorder %s335, %s336
      %p350 = scmp.eq.s32.totalorder %s30, 3
      %p351 = por %p349, %p350
      %p353 = scmp.ne.s32.totalorder %s336, %s352
      %p354 = scmp.eq.s32.totalorder %s30, 0
      %p355 = por %p353, %p354
      %s356 = ssub.s32 %s32, %s39
      %p357 = scmp.eq.s32.totalorder %s356, 0
      %s359 = sadd.s32 %s358, 1
      %s360 = scalar_select %p357, %s358, %s359
      %p363 = pneg %p357
      %p364 = scmp.eq.s32.totalorder %s24, 3
      %p365 = por %p363, %p364
      %p366 = scmp.ne.s32.totalorder %s358, %s361
      %p367 = scmp.eq.s32.totalorder %s24, 0
      %p368 = por %p366, %p367
      %p369 = scmp.ne.s32.totalorder %s358, %s361
      %p370 = scmp.eq.s32.totalorder %s29, 3
      %p371 = por %p369, %p370
      %p372 = scmp.ne.s32.totalorder %s361, %s362
      %p373 = scmp.eq.s32.totalorder %s29, 0
      %p374 = por %p372, %p373
      %p375 = scmp.ne.s32.totalorder %s361, %s362
      %p376 = scmp.eq.s32.totalorder %s30, 3
      %p377 = por %p375, %p376
      %p379 = scmp.ne.s32.totalorder %s362, %s378
      %p380 = scmp.eq.s32.totalorder %s30, 0
      %p381 = por %p379, %p380
      %s383 = sadd.s32 %s382, 1
      %p386 = scmp.eq.s32.totalorder %s24, 3
      %p387 = scmp.ne.s32.totalorder %s382, %s384
      %p388 = scmp.eq.s32.totalorder %s24, 0
      %p389 = por %p387, %p388
      %p390 = scmp.ne.s32.totalorder %s382, %s384
      %p391 = scmp.eq.s32.totalorder %s29, 3
      %p392 = por %p390, %p391
      %p393 = scmp.ne.s32.totalorder %s384, %s385
      %p394 = scmp.eq.s32.totalorder %s29, 0
      %p395 = por %p393, %p394
      %p396 = scmp.ne.s32.totalorder %s384, %s385
      %p397 = scmp.eq.s32.totalorder %s30, 3
      %p398 = por %p396, %p397
      %p400 = scmp.ne.s32.totalorder %s385, %s399
      %p401 = scmp.eq.s32.totalorder %s30, 0
      %p402 = por %p400, %p401
      %s404 = sadd.s32 %s403, 1
      %p407 = scmp.eq.s32.totalorder %s24, 3
      %p408 = scmp.ne.s32.totalorder %s403, %s405
      %p409 = scmp.eq.s32.totalorder %s24, 0
      %p410 = por %p408, %p409
      %p411 = scmp.ne.s32.totalorder %s403, %s405
      %p412 = scmp.eq.s32.totalorder %s29, 3
      %p413 = por %p411, %p412
      %p414 = scmp.ne.s32.totalorder %s405, %s406
      %p415 = scmp.eq.s32.totalorder %s29, 0
      %p416 = por %p414, %p415
      %p417 = scmp.ne.s32.totalorder %s405, %s406
      %p418 = scmp.eq.s32.totalorder %s30, 3
      %p419 = por %p417, %p418
      %p421 = scmp.ne.s32.totalorder %s406, %s420
      %p422 = scmp.eq.s32.totalorder %s30, 0
      %p423 = por %p421, %p422
      %s424 = ssub.s32 %s31, %s43
      %p425 = scmp.eq.s32.totalorder %s424, 0
      %s427 = sadd.s32 %s426, 1
      %s428 = scalar_select %p425, %s426, %s427
      %p431 = pneg %p425
      %p432 = scmp.eq.s32.totalorder %s24, 3
      %p433 = por %p431, %p432
      %p434 = scmp.ne.s32.totalorder %s426, %s429
      %p435 = scmp.eq.s32.totalorder %s24, 0
      %p436 = por %p434, %p435
      %p437 = scmp.ne.s32.totalorder %s426, %s429
      %p438 = scmp.eq.s32.totalorder %s29, 3
      %p439 = por %p437, %p438
      %p440 = scmp.ne.s32.totalorder %s429, %s430
      %p441 = scmp.eq.s32.totalorder %s29, 0
      %p442 = por %p440, %p441
      %p443 = scmp.ne.s32.totalorder %s429, %s430
      %p444 = scmp.eq.s32.totalorder %s30, 3
      %p445 = por %p443, %p444
      %p447 = scmp.ne.s32.totalorder %s430, %s446
      %p448 = scmp.eq.s32.totalorder %s30, 0
      %p449 = por %p447, %p448
      %p450 = scmp.le.s32.totalorder 1, %s24
      %p451 = scmp.lt.s32.totalorder %s24, 5
      %p452 = pnand %p450, %p451
      %p453 = pneg %p452
      // Predicated region
      $region9: #{encoder_forward.1} parent=5 // pred_check
        _
      $region10: #{encoder_forward.1} parent=5 // pred_check_branch
        %455 = sbr.rel (%p452) target = $region12
      $region11: #{encoder_forward.1} parent=5 // pred_region
        %s456 = ssub.s32 %s24, 1
        // Predicated region
        $region13: #{encoder_forward.1} parent=11 // pred_check
          %p457 = pneg %p395
        $region14: #{encoder_forward.1} parent=11 // pred_check_branch
          %459 = sbr.rel (%p457) target = $region16
        $region15: #{encoder_forward.1} parent=11 // pred_region
          _
        $region16: #{encoder_forward.1} parent=11 // pred_fallthru
          _
        // Predicated region
        $region17: #{encoder_forward.1} parent=11 // pred_check
          %p460 = pneg %p416
        $region18: #{encoder_forward.1} parent=11 // pred_check_branch
          %462 = sbr.rel (%p460) target = $region20
        $region19: #{encoder_forward.1} parent=11 // pred_region
          _
        $region20: #{encoder_forward.1} parent=11 // pred_fallthru
          _
      $region12: #{encoder_forward.1} parent=5 // pred_fallthru
        _
      %p463 = scmp.lt.s32.totalorder %s24, 4
      // Predicated region
      $region21: #{encoder_forward.1} parent=5 // pred_check
        %p464 = pneg %p463
      $region22: #{encoder_forward.1} parent=5 // pred_check_branch
        %466 = sbr.rel (%p464) target = $region24
      $region23: #{encoder_forward.1} parent=5 // pred_region
        // Predicated region
        $region25: #{encoder_forward.1} parent=23 // pred_check
          %p467 = pneg %p56
        $region26: #{encoder_forward.1} parent=23 // pred_check_branch
          %469 = sbr.rel (%p467) target = $region28
        $region27: #{encoder_forward.1} parent=23 // pred_region
          %p470 = scmp.lt.s32.totalorder %s31, 1
          %s471 = scalar_select %p470, %s31, 1
          %s472 = smul.addr %s471, 8
          %s473 = scalar_lea.vmem %s0, %s472
        $region28: #{encoder_forward.1} parent=23 // pred_fallthru
          _
        // Predicated region
        $region29: #{encoder_forward.1} parent=23 // pred_check
          %p474 = pneg %p82
        $region30: #{encoder_forward.1} parent=23 // pred_check_branch
          %476 = sbr.rel (%p474) target = $region32
        $region31: #{encoder_forward.1} parent=23 // pred_region
          %p477 = scmp.lt.s32.totalorder %s32, 1
          %s478 = scalar_select %p477, %s32, 1
          %s479 = scalar_lea.vmem %s1, %s478
        $region32: #{encoder_forward.1} parent=23 // pred_fallthru
          _
        // Predicated region
        $region33: #{encoder_forward.1} parent=23 // pred_check
          %p480 = pneg %p108
        $region34: #{encoder_forward.1} parent=23 // pred_check_branch
          %482 = sbr.rel (%p480) target = $region36
        $region35: #{encoder_forward.1} parent=23 // pred_region
          %p483 = scmp.lt.s32.totalorder %s32, 1
          %s484 = scalar_select %p483, %s32, 1
          %s485 = scalar_lea.vmem %s2, %s484
        $region36: #{encoder_forward.1} parent=23 // pred_fallthru
          _
        // Predicated region
        $region37: #{encoder_forward.1} parent=23 // pred_check
          %p486 = pneg %p134
        $region38: #{encoder_forward.1} parent=23 // pred_check_branch
          %488 = sbr.rel (%p486) target = $region40
        $region39: #{encoder_forward.1} parent=23 // pred_region
          %p489 = scmp.lt.s32.totalorder %s32, 1
          %s490 = scalar_select %p489, %s32, 1
          %s491 = smul.addr %s490, 4
          %s492 = smul.addr %s491, 4
          %s493 = scalar_lea.vmem %s3, %s492
        $region40: #{encoder_forward.1} parent=23 // pred_fallthru
          _
        // Predicated region
        $region41: #{encoder_forward.1} parent=23 // pred_check
          %p494 = pneg %p160
        $region42: #{encoder_forward.1} parent=23 // pred_check_branch
          %496 = sbr.rel (%p494) target = $region44
        $region43: #{encoder_forward.1} parent=23 // pred_region
          %p497 = scmp.lt.s32.totalorder %s32, 1
          %s498 = scalar_select %p497, %s32, 1
          %s499 = scalar_lea.vmem %s4, %s498
        $region44: #{encoder_forward.1} parent=23 // pred_fallthru
          _
        // Predicated region
        $region45: #{encoder_forward.1} parent=23 // pred_check
          %p500 = pneg %p186
        $region46: #{encoder_forward.1} parent=23 // pred_check_branch
          %502 = sbr.rel (%p500) target = $region48
        $region47: #{encoder_forward.1} parent=23 // pred_region
          %p503 = scmp.lt.s32.totalorder %s32, 1
          %s504 = scalar_select %p503, %s32, 1
          %s505 = smul.addr %s504, 4
          %s506 = smul.addr %s505, 4
          %s507 = scalar_lea.vmem %s5, %s506
        $region48: #{encoder_forward.1} parent=23 // pred_fallthru
          _
        // Predicated region
        $region49: #{encoder_forward.1} parent=23 // pred_check
          %p508 = pneg %p212
        $region50: #{encoder_forward.1} parent=23 // pred_check_branch
          %510 = sbr.rel (%p508) target = $region52
        $region51: #{encoder_forward.1} parent=23 // pred_region
          %p511 = scmp.lt.s32.totalorder %s32, 1
          %s512 = scalar_select %p511, %s32, 1
          %s513 = scalar_lea.vmem %s6, %s512
        $region52: #{encoder_forward.1} parent=23 // pred_fallthru
          _
        // Predicated region
        $region53: #{encoder_forward.1} parent=23 // pred_check
          %p514 = pneg %p238
        $region54: #{encoder_forward.1} parent=23 // pred_check_branch
          %516 = sbr.rel (%p514) target = $region56
        $region55: #{encoder_forward.1} parent=23 // pred_region
          %p517 = scmp.lt.s32.totalorder %s32, 1
          %s518 = scalar_select %p517, %s32, 1
          %s519 = scalar_lea.vmem %s7, %s518
        $region56: #{encoder_forward.1} parent=23 // pred_fallthru
          _
        // Predicated region
        $region57: #{encoder_forward.1} parent=23 // pred_check
          %p520 = pneg %p264
        $region58: #{encoder_forward.1} parent=23 // pred_check_branch
          %522 = sbr.rel (%p520) target = $region60
        $region59: #{encoder_forward.1} parent=23 // pred_region
          %p523 = scmp.lt.s32.totalorder %s32, 1
          %s524 = scalar_select %p523, %s32, 1
          %s525 = scalar_lea.vmem %s8, %s524
        $region60: #{encoder_forward.1} parent=23 // pred_fallthru
          _
        // Predicated region
        $region61: #{encoder_forward.1} parent=23 // pred_check
          %p526 = pneg %p290
        $region62: #{encoder_forward.1} parent=23 // pred_check_branch
          %528 = sbr.rel (%p526) target = $region64
        $region63: #{encoder_forward.1} parent=23 // pred_region
          %p529 = scmp.lt.s32.totalorder %s32, 1
          %s530 = scalar_select %p529, %s32, 1
          %s531 = smul.addr %s530, 4
          %s532 = smul.addr %s531, 4
          %s533 = scalar_lea.vmem %s9, %s532
        $region64: #{encoder_forward.1} parent=23 // pred_fallthru
          _
        // Predicated region
        $region65: #{encoder_forward.1} parent=23 // pred_check
          %p534 = pneg %p316
        $region66: #{encoder_forward.1} parent=23 // pred_check_branch
          %536 = sbr.rel (%p534) target = $region68
        $region67: #{encoder_forward.1} parent=23 // pred_region
          %p537 = scmp.lt.s32.totalorder %s32, 1
          %s538 = scalar_select %p537, %s32, 1
          %s539 = scalar_lea.vmem %s10, %s538
        $region68: #{encoder_forward.1} parent=23 // pred_fallthru
          _
        // Predicated region
        $region69: #{encoder_forward.1} parent=23 // pred_check
          %p540 = pneg %p342
        $region70: #{encoder_forward.1} parent=23 // pred_check_branch
          %542 = sbr.rel (%p540) target = $region72
        $region71: #{encoder_forward.1} parent=23 // pred_region
          %p543 = scmp.lt.s32.totalorder %s32, 1
          %s544 = scalar_select %p543, %s32, 1
          %s545 = smul.addr %s544, 16
          %s546 = smul.addr %s545, 4
          %s547 = scalar_lea.vmem %s11, %s546
        $region72: #{encoder_forward.1} parent=23 // pred_fallthru
          _
        // Predicated region
        $region73: #{encoder_forward.1} parent=23 // pred_check
          %p548 = pneg %p368
        $region74: #{encoder_forward.1} parent=23 // pred_check_branch
          %550 = sbr.rel (%p548) target = $region76
        $region75: #{encoder_forward.1} parent=23 // pred_region
          %p551 = scmp.lt.s32.totalorder %s32, 1
          %s552 = scalar_select %p551, %s32, 1
          %s553 = scalar_lea.vmem %s12, %s552
        $region76: #{encoder_forward.1} parent=23 // pred_fallthru
          _
      $region24: #{encoder_forward.1} parent=5 // pred_fallthru
        _
      %p554 = scmp.le.s32.totalorder 1, %s24
      %p555 = scmp.lt.s32.totalorder %s24, 5
      %p556 = pnand %p554, %p555
      %p557 = pneg %p556
      // Predicated region
      $region77: #{encoder_forward.1} parent=5 // pred_check
        _
      $region78: #{encoder_forward.1} parent=5 // pred_check_branch
        %559 = sbr.rel (%p556) target = $region80
      $region79: #{encoder_forward.1} parent=5 // pred_region
        %s560 = ssub.s32 %s24, 1
        %p561 = scmp.lt.s32.totalorder %s33, 1
        %s562 = scalar_select %p561, %s33, 1
        %s563 = smul.addr %s562, 8
        %s564 = scalar_lea.vmem %s0, %s563
        %p565 = pneg %p62
        %p566 = pneg %p59
        %p567 = scmp.lt.s32.totalorder %s34, 1
        %s568 = scalar_select %p567, %s34, 1
        %s569 = scalar_lea.vmem %s1, %s568
        %p570 = pneg %p88
        %p571 = pneg %p85
        %p572 = scmp.lt.s32.totalorder %s34, 1
        %s573 = scalar_select %p572, %s34, 1
        %s574 = scalar_lea.vmem %s2, %s573
        %p575 = pneg %p114
        %p576 = pneg %p111
        %p577 = scmp.lt.s32.totalorder %s34, 1
        %s578 = scalar_select %p577, %s34, 1
        %s579 = smul.addr %s578, 4
        %s580 = smul.addr %s579, 4
        %s581 = scalar_lea.vmem %s3, %s580
        %p582 = pneg %p140
        %p583 = pneg %p137
        %p584 = scmp.lt.s32.totalorder %s34, 1
        %s585 = scalar_select %p584, %s34, 1
        %s586 = scalar_lea.vmem %s4, %s585
        %p587 = pneg %p166
        %p588 = pneg %p163
        %p589 = scmp.lt.s32.totalorder %s34, 1
        %s590 = scalar_select %p589, %s34, 1
        %s591 = smul.addr %s590, 4
        %s592 = smul.addr %s591, 4
        %s593 = scalar_lea.vmem %s5, %s592
        %p594 = pneg %p192
        %p595 = pneg %p189
        %p596 = scmp.lt.s32.totalorder %s34, 1
        %s597 = scalar_select %p596, %s34, 1
        %s598 = scalar_lea.vmem %s6, %s597
        %p599 = pneg %p218
        %p600 = pneg %p215
        %p601 = scmp.lt.s32.totalorder %s34, 1
        %s602 = scalar_select %p601, %s34, 1
        %s603 = scalar_lea.vmem %s7, %s602
        %p604 = pneg %p244
        %p605 = pneg %p241
        %p606 = scmp.lt.s32.totalorder %s34, 1
        %s607 = scalar_select %p606, %s34, 1
        %s608 = scalar_lea.vmem %s8, %s607
        %p609 = pneg %p270
        %p610 = pneg %p267
        %p611 = scmp.lt.s32.totalorder %s34, 1
        %s612 = scalar_select %p611, %s34, 1
        %s613 = smul.addr %s612, 4
        %s614 = smul.addr %s613, 4
        %s615 = scalar_lea.vmem %s9, %s614
        %p616 = pneg %p296
        %p617 = pneg %p293
        %p618 = scmp.lt.s32.totalorder %s34, 1
        %s619 = scalar_select %p618, %s34, 1
        %s620 = scalar_lea.vmem %s10, %s619
        %p621 = pneg %p322
        %p622 = pneg %p319
        %p623 = scmp.lt.s32.totalorder %s34, 1
        %s624 = scalar_select %p623, %s34, 1
        %s625 = smul.addr %s624, 16
        %s626 = smul.addr %s625, 4
        %s627 = scalar_lea.vmem %s11, %s626
        %p628 = pneg %p348
        %p629 = pneg %p345
        %p630 = scmp.lt.s32.totalorder %s34, 1
        %s631 = scalar_select %p630, %s34, 1
        %s632 = scalar_lea.vmem %s12, %s631
        %p633 = pneg %p374
        %p634 = pneg %p371
        %p635 = pneg %p395
        %p636 = pneg %p392
        %p637 = pneg %p416
        %p638 = pneg %p413
        %p639 = pneg %p442
        %p640 = pneg %p439
        %s641 = sand.u32 %s429, 1
        %s642 = scalar_lea.sflag [#allocation4], %s641
        %s643 = sand.u32 %s429, 1
        %s644 = smul.addr %s643, 8
        %s645 = scalar_lea.vmem [#allocation3], %s644
        %p646 = scmp.lt.s32.totalorder %s33, 1
        %s647 = scalar_select %p646, %s33, 1
        %s648 = smul.addr %s647, 8
        %s649 = scalar_lea.vmem %s0, %s648
        %p650 = scmp.lt.s32.totalorder %s34, 1
        %s651 = scalar_select %p650, %s34, 1
        %s652 = scalar_lea.vmem %s1, %s651
        %p653 = scmp.lt.s32.totalorder %s34, 1
        %s654 = scalar_select %p653, %s34, 1
        %s655 = scalar_lea.vmem %s2, %s654
        %p656 = scmp.lt.s32.totalorder %s34, 1
        %s657 = scalar_select %p656, %s34, 1
        %s658 = smul.addr %s657, 4
        %s659 = smul.addr %s658, 4
        %s660 = scalar_lea.vmem %s3, %s659
        %p661 = scmp.lt.s32.totalorder %s34, 1
        %s662 = scalar_select %p661, %s34, 1
        %s663 = scalar_lea.vmem %s4, %s662
        %p664 = scmp.lt.s32.totalorder %s34, 1
        %s665 = scalar_select %p664, %s34, 1
        %s666 = smul.addr %s665, 4
        %s667 = smul.addr %s666, 4
        %s668 = scalar_lea.vmem %s5, %s667
        %p669 = scmp.lt.s32.totalorder %s34, 1
        %s670 = scalar_select %p669, %s34, 1
        %s671 = scalar_lea.vmem %s6, %s670
        %p672 = scmp.lt.s32.totalorder %s34, 1
        %s673 = scalar_select %p672, %s34, 1
        %s674 = scalar_lea.vmem %s7, %s673
        %p675 = scmp.lt.s32.totalorder %s34, 1
        %s676 = scalar_select %p675, %s34, 1
        %s677 = scalar_lea.vmem %s8, %s676
        %p678 = scmp.lt.s32.totalorder %s34, 1
        %s679 = scalar_select %p678, %s34, 1
        %s680 = smul.addr %s679, 4
        %s681 = smul.addr %s680, 4
        %s682 = scalar_lea.vmem %s9, %s681
        %p683 = scmp.lt.s32.totalorder %s34, 1
        %s684 = scalar_select %p683, %s34, 1
        %s685 = scalar_lea.vmem %s10, %s684
        %p686 = scmp.lt.s32.totalorder %s34, 1
        %s687 = scalar_select %p686, %s34, 1
        %s688 = smul.addr %s687, 16
        %s689 = smul.addr %s688, 4
        %s690 = scalar_lea.vmem %s11, %s689
        %p691 = scmp.lt.s32.totalorder %s34, 1
        %s692 = scalar_select %p691, %s34, 1
        %s693 = scalar_lea.vmem %s12, %s692
        %p695 = scmp.eq.s32.totalorder %s34, 0
        // Predicated region
        $region81: #{encoder_forward.1} parent=79 // pred_check
          %p696 = pneg %p695
        $region82: #{encoder_forward.1} parent=79 // pred_check_branch
          %698 = sbr.rel (%p696) target = $region84
        $region83: #{encoder_forward.1} parent=79 // pred_region
          %v699 = vld [vmem:[%s649] sm:$0xff]
          %vm700 = vcmask 261120
          %701 = vst.msk [vmem:[#allocation2] sm:$0xff] %vm700, %v699
        $region84: #{encoder_forward.1} parent=79 // pred_fallthru
          _
        %v702 = vld [vmem:[#allocation2] sm:$0xff]
        %v703 = vld [vmem:[%s652] sm:$0x1]
        %v704 = vld [vmem:[%s655] sm:$0x1]
        %vm705 = vcmask 261120
        %v706 = vsel %vm705, %v702, 0.0
        %707 = vadd.xlane.f32.xlu0 %v706
        %v708 = vpop.xlane.xlu0 %707
        %v709 = vrcp.pop 32.0
        %v710 = vmul.f32 %v708, %v709
        %v711 = vsub.f32 %v702, %v710
        %v712 = vmul.f32 %v711, %v711
        %v713 = vsel %vm705, %v712, 0.0
        %714 = vadd.xlane.f32.xlu0 %v713
        %v715 = vpop.xlane.xlu0 %714
        %v716 = vmul.f32 %v715, %v709
        %v717 = vadd.f32 %v716, 1e-05
        %v718 = vrsqrt.pop %v717
        %v719 = vmul.f32 %v711, %v718
        %v721 = vlaneseq
        %v722 = vshrl.u32 %v721, 7
        %v723 = vsub.s32 0, %v722
        %v724 = vrot.slane %v703, %v723
        %v726 = vmul.f32 %v719, %v724
        %v728 = vlaneseq
        %v729 = vshrl.u32 %v728, 7
        %v730 = vsub.s32 0, %v729
        %v731 = vrot.slane %v704, %v730
        %v733 = vadd.f32 %v726, %v731
        %v734 = vpack.c.bf16 %v733, %v733
        %v735 = vld [vmem:[%s660] sm:$0xf]
        %v736 = vld [vmem:[%s660 + $0x4] sm:$0xf]
        %v737 = vld [vmem:[%s660 + $0x8] sm:$0xf]
        %v738 = vld [vmem:[%s660 + $0xc] sm:$0xf]
        %v739 = vld [vmem:[%s663] sm:$0x1]
        %v741 = vlaneseq
        %v742 = vshrl.u32 %v741, 7
        %v743 = vsub.s32 0, %v742
        %v744 = vrot.slane %v739, %v743
        %v750 = vunpack.c.l.b16 %v735
        %v751 = vunpack.c.l.b16 %v736
        %v752 = vunpack.c.l.b16 %v737
        %v753 = vunpack.c.l.b16 %v738
        %v754 = vpack.c.b16 %v751, %v750
        %v755 = vpack.c.b16 %v753, %v752
        %v759 = vsel %vm705, %v734, 0
        %761 = vmatprep.subr.bf16.mxu0 0
        %762 = vmatpush1.bf16.msra.mxu0 %v754
        %763 = vmatprep.subr.bf16.mxu0 0
        %764 = vmatpush1.bf16.msra.mxu0 %v755
        %765 = vmatprep.subr.bf16.mxu0 0
        %766 = vmatpush1.bf16.msra.mxu0 0
        %767 = vmatprep.subr.bf16.mxu0 0
        %768 = vmatpush1.bf16.msra.mxu0 0
        %769 = vmatprep.subr.bf16.mxu0 0
        %770 = vmatpush1.bf16.msra.mxu0 0
        %771 = vmatprep.subr.bf16.mxu0 0
        %772 = vmatpush1.bf16.msra.mxu0 0
        %773 = vmatprep.subr.bf16.mxu0 0
        %774 = vmatpush1.bf16.msra.mxu0 0
        %775 = vmatprep.subr.bf16.mxu0 0
        %776 = vmatpush1.bf16.msra.mxu0 0
        %777 = vmatprep.subr.bf16.mxu0 0
        %778 = vmatpush1.bf16.msra.mxu0 0
        %779 = vmatprep.subr.bf16.mxu0 0
        %780 = vmatpush1.bf16.msra.mxu0 0
        %781 = vmatprep.subr.bf16.mxu0 0
        %782 = vmatpush1.bf16.msra.mxu0 0
        %783 = vmatprep.subr.bf16.mxu0 0
        %784 = vmatpush1.bf16.msra.mxu0 0
        %785 = vmatprep.subr.bf16.mxu0 0
        %786 = vmatpush1.bf16.msra.mxu0 0
        %787 = vmatprep.subr.bf16.mxu0 0
        %788 = vmatpush1.bf16.msra.mxu0 0
        %789 = vmatprep.subr.bf16.mxu0 0
        %790 = vmatpush1.bf16.msra.mxu0 0
        %791 = vmatprep.subr.bf16.mxu0 0
        %792 = vmatpush1.bf16.msra.mxu0 0
        %793 = vmatprep.mubr.bf16.mxu0 0
        %794 = vmatmul.mubr.bf16.gmra.mrb[0].mxu0 %v759
        %v795 = vpop.f32.mrb[0].mxu0
        %v796 = vadd.f32 %v744, %v795
        %v797 = vpop.f32.mrb[0].mxu0
        %v798 = vpop.f32.mrb[0].mxu0
        %v799 = vpop.f32.mrb[0].mxu0
        %800 = vdwg.mxu0
        %802 = vrot.lane.b32.xlu0 %v796, 120
        %v803 = vpop.permute.xlu0 %802
        %805 = vrot.lane.b32.xlu0 %v796, 112
        %v806 = vpop.permute.xlu0 %805
        %808 = vrot.lane.b32.xlu0 %v796, 104
        %v809 = vpop.permute.xlu0 %808
        %v811 = vcombine.low %v796, %v806
        %v812 = vcombine.high %v796, %v806
        %v814 = vunpack.c.l.s4 1983009808
        %v815 = vunpack.c.0.s8 %v814
        %v816 = vlaneseq
        %v817 = vshrl.u32 %v816, 7
        %v818 = vsub.s32 %v815, %v817
        %v819 = vrot.slane %v811, %v818
        %v821 = vunpack.c.l.s4 1983009808
        %v822 = vunpack.c.0.s8 %v821
        %v823 = vlaneseq
        %v824 = vshrl.u32 %v823, 7
        %v825 = vsub.s32 %v822, %v824
        %v826 = vrot.slane %v812, %v825
        %v827 = vcombine.low %v803, %v809
        %v828 = vcombine.high %v803, %v809
        %v830 = vunpack.c.l.s4 1983009808
        %v831 = vunpack.c.0.s8 %v830
        %v832 = vlaneseq
        %v833 = vshrl.u32 %v832, 7
        %v834 = vsub.s32 %v831, %v833
        %v835 = vrot.slane %v827, %v834
        %v837 = vunpack.c.l.s4 1983009808
        %v838 = vunpack.c.0.s8 %v837
        %v839 = vlaneseq
        %v840 = vshrl.u32 %v839, 7
        %v841 = vsub.s32 %v838, %v840
        %v842 = vrot.slane %v828, %v841
        %v843 = vcombine.low %v819, %v835
        %v844 = vcombine.high %v819, %v835
        %v846 = vunpack.c.l.s4 1934713408
        %v847 = vunpack.c.0.s8 %v846
        %v848 = vlaneseq
        %v849 = vshrl.u32 %v848, 7
        %v850 = vsub.s32 %v847, %v849
        %v851 = vrot.slane %v843, %v850
        %v853 = vunpack.c.l.s4 1934713408
        %v854 = vunpack.c.0.s8 %v853
        %v855 = vlaneseq
        %v856 = vshrl.u32 %v855, 7
        %v857 = vsub.s32 %v854, %v856
        %v858 = vrot.slane %v844, %v857
        %v859 = vcombine.low %v826, %v842
        %v860 = vcombine.high %v826, %v842
        %v862 = vunpack.c.l.s4 1934713408
        %v863 = vunpack.c.0.s8 %v862
        %v864 = vlaneseq
        %v865 = vshrl.u32 %v864, 7
        %v866 = vsub.s32 %v863, %v865
        %v867 = vrot.slane %v859, %v866
        %v869 = vunpack.c.l.s4 1934713408
        %v870 = vunpack.c.0.s8 %v869
        %v871 = vlaneseq
        %v872 = vshrl.u32 %v871, 7
        %v873 = vsub.s32 %v870, %v872
        %v874 = vrot.slane %v860, %v873
        %v875 = vcombine.high %v851, 0.0
        %v876 = vcombine.high %v858, 0.0
        %v877 = vcombine.high %v867, 0.0
        %v878 = vcombine.high %v874, 0.0
        %v879 = vcombine.low %v851, %v858
        %v881 = vunpack.c.l.s4 1983009808
        %v882 = vunpack.c.0.s8 %v881
        %v883 = vlaneseq
        %v884 = vshrl.u32 %v883, 7
        %v885 = vsub.s32 %v882, %v884
        %v886 = vrot.slane %v879, %v885
        %v887 = vcombine.low %v875, %v876
        %v889 = vunpack.c.l.s4 1983009808
        %v890 = vunpack.c.0.s8 %v889
        %v891 = vlaneseq
        %v892 = vshrl.u32 %v891, 7
        %v893 = vsub.s32 %v890, %v892
        %v894 = vrot.slane %v887, %v893
        %v895 = vcombine.low %v867, %v874
        %v897 = vunpack.c.l.s4 1983009808
        %v898 = vunpack.c.0.s8 %v897
        %v899 = vlaneseq
        %v900 = vshrl.u32 %v899, 7
        %v901 = vsub.s32 %v898, %v900
        %v902 = vrot.slane %v895, %v901
        %v903 = vcombine.low %v877, %v878
        %v905 = vunpack.c.l.s4 1983009808
        %v906 = vunpack.c.0.s8 %v905
        %v907 = vlaneseq
        %v908 = vshrl.u32 %v907, 7
        %v909 = vsub.s32 %v906, %v908
        %v910 = vrot.slane %v903, %v909
        %v911 = vcombine.low %v886, %v894
        %v912 = vcombine.high %v886, %v894
        %v914 = vunpack.c.l.s4 1934713408
        %v915 = vunpack.c.0.s8 %v914
        %v916 = vlaneseq
        %v917 = vshrl.u32 %v916, 7
        %v918 = vsub.s32 %v915, %v917
        %v919 = vrot.slane %v911, %v918
        %v921 = vunpack.c.l.s4 1934713408
        %v922 = vunpack.c.0.s8 %v921
        %v923 = vlaneseq
        %v924 = vshrl.u32 %v923, 7
        %v925 = vsub.s32 %v922, %v924
        %v926 = vrot.slane %v912, %v925
        %v927 = vcombine.low %v902, %v910
        %v928 = vcombine.high %v902, %v910
        %v930 = vunpack.c.l.s4 1934713408
        %v931 = vunpack.c.0.s8 %v930
        %v932 = vlaneseq
        %v933 = vshrl.u32 %v932, 7
        %v934 = vsub.s32 %v931, %v933
        %v935 = vrot.slane %v927, %v934
        %v937 = vunpack.c.l.s4 1934713408
        %v938 = vunpack.c.0.s8 %v937
        %v939 = vlaneseq
        %v940 = vshrl.u32 %v939, 7
        %v941 = vsub.s32 %v938, %v940
        %v942 = vrot.slane %v928, %v941
        %v943 = vcombine.low %v919, %v935
        %v944 = vcombine.high %v919, %v935
        %v945 = vcombine.low %v926, %v942
        %v946 = vcombine.high %v926, %v942
        %947 = vrot.lane.b32.xlu0 %v796, 96
        %v948 = vpop.permute.xlu0 %947
        %949 = vrot.lane.b32.xlu0 %v803, 96
        %v950 = vpop.permute.xlu0 %949
        %951 = vrot.lane.b32.xlu0 %v806, 96
        %v952 = vpop.permute.xlu0 %951
        %953 = vrot.lane.b32.xlu0 %v809, 96
        %v954 = vpop.permute.xlu0 %953
        %v959 = vcombine.low %v948, %v952
        %v960 = vcombine.high %v948, %v952
        %v962 = vunpack.c.l.s4 1983009808
        %v963 = vunpack.c.0.s8 %v962
        %v964 = vlaneseq
        %v965 = vshrl.u32 %v964, 7
        %v966 = vsub.s32 %v963, %v965
        %v967 = vrot.slane %v959, %v966
        %v969 = vunpack.c.l.s4 1983009808
        %v970 = vunpack.c.0.s8 %v969
        %v971 = vlaneseq
        %v972 = vshrl.u32 %v971, 7
        %v973 = vsub.s32 %v970, %v972
        %v974 = vrot.slane %v960, %v973
        %v975 = vcombine.low %v950, %v954
        %v976 = vcombine.high %v950, %v954
        %v978 = vunpack.c.l.s4 1983009808
        %v979 = vunpack.c.0.s8 %v978
        %v980 = vlaneseq
        %v981 = vshrl.u32 %v980, 7
        %v982 = vsub.s32 %v979, %v981
        %v983 = vrot.slane %v975, %v982
        %v985 = vunpack.c.l.s4 1983009808
        %v986 = vunpack.c.0.s8 %v985
        %v987 = vlaneseq
        %v988 = vshrl.u32 %v987, 7
        %v989 = vsub.s32 %v986, %v988
        %v990 = vrot.slane %v976, %v989
        %v991 = vcombine.low %v967, %v983
        %v992 = vcombine.high %v967, %v983
        %v994 = vunpack.c.l.s4 1934713408
        %v995 = vunpack.c.0.s8 %v994
        %v996 = vlaneseq
        %v997 = vshrl.u32 %v996, 7
        %v998 = vsub.s32 %v995, %v997
        %v999 = vrot.slane %v991, %v998
        %v1001 = vunpack.c.l.s4 1934713408
        %v1002 = vunpack.c.0.s8 %v1001
        %v1003 = vlaneseq
        %v1004 = vshrl.u32 %v1003, 7
        %v1005 = vsub.s32 %v1002, %v1004
        %v1006 = vrot.slane %v992, %v1005
        %v1007 = vcombine.low %v974, %v990
        %v1008 = vcombine.high %v974, %v990
        %v1010 = vunpack.c.l.s4 1934713408
        %v1011 = vunpack.c.0.s8 %v1010
        %v1012 = vlaneseq
        %v1013 = vshrl.u32 %v1012, 7
        %v1014 = vsub.s32 %v1011, %v1013
        %v1015 = vrot.slane %v1007, %v1014
        %v1017 = vunpack.c.l.s4 1934713408
        %v1018 = vunpack.c.0.s8 %v1017
        %v1019 = vlaneseq
        %v1020 = vshrl.u32 %v1019, 7
        %v1021 = vsub.s32 %v1018, %v1020
        %v1022 = vrot.slane %v1008, %v1021
        %v1023 = vcombine.high %v999, 0.0
        %v1024 = vcombine.high %v1006, 0.0
        %v1025 = vcombine.high %v1015, 0.0
        %v1026 = vcombine.high %v1022, 0.0
        %v1027 = vcombine.low %v999, %v1006
        %v1029 = vunpack.c.l.s4 1983009808
        %v1030 = vunpack.c.0.s8 %v1029
        %v1031 = vlaneseq
        %v1032 = vshrl.u32 %v1031, 7
        %v1033 = vsub.s32 %v1030, %v1032
        %v1034 = vrot.slane %v1027, %v1033
        %v1035 = vcombine.low %v1023, %v1024
        %v1037 = vunpack.c.l.s4 1983009808
        %v1038 = vunpack.c.0.s8 %v1037
        %v1039 = vlaneseq
        %v1040 = vshrl.u32 %v1039, 7
        %v1041 = vsub.s32 %v1038, %v1040
        %v1042 = vrot.slane %v1035, %v1041
        %v1043 = vcombine.low %v1015, %v1022
        %v1045 = vunpack.c.l.s4 1983009808
        %v1046 = vunpack.c.0.s8 %v1045
        %v1047 = vlaneseq
        %v1048 = vshrl.u32 %v1047, 7
        %v1049 = vsub.s32 %v1046, %v1048
        %v1050 = vrot.slane %v1043, %v1049
        %v1051 = vcombine.low %v1025, %v1026
        %v1053 = vunpack.c.l.s4 1983009808
        %v1054 = vunpack.c.0.s8 %v1053
        %v1055 = vlaneseq
        %v1056 = vshrl.u32 %v1055, 7
        %v1057 = vsub.s32 %v1054, %v1056
        %v1058 = vrot.slane %v1051, %v1057
        %v1059 = vcombine.low %v1034, %v1042
        %v1060 = vcombine.high %v1034, %v1042
        %v1062 = vunpack.c.l.s4 1934713408
        %v1063 = vunpack.c.0.s8 %v1062
        %v1064 = vlaneseq
        %v1065 = vshrl.u32 %v1064, 7
        %v1066 = vsub.s32 %v1063, %v1065
        %v1067 = vrot.slane %v1059, %v1066
        %v1069 = vunpack.c.l.s4 1934713408
        %v1070 = vunpack.c.0.s8 %v1069
        %v1071 = vlaneseq
        %v1072 = vshrl.u32 %v1071, 7
        %v1073 = vsub.s32 %v1070, %v1072
        %v1074 = vrot.slane %v1060, %v1073
        %v1075 = vcombine.low %v1050, %v1058
        %v1076 = vcombine.high %v1050, %v1058
        %v1078 = vunpack.c.l.s4 1934713408
        %v1079 = vunpack.c.0.s8 %v1078
        %v1080 = vlaneseq
        %v1081 = vshrl.u32 %v1080, 7
        %v1082 = vsub.s32 %v1079, %v1081
        %v1083 = vrot.slane %v1075, %v1082
        %v1085 = vunpack.c.l.s4 1934713408
        %v1086 = vunpack.c.0.s8 %v1085
        %v1087 = vlaneseq
        %v1088 = vshrl.u32 %v1087, 7
        %v1089 = vsub.s32 %v1086, %v1088
        %v1090 = vrot.slane %v1076, %v1089
        %v1091 = vcombine.low %v1067, %v1083
        %v1092 = vcombine.high %v1067, %v1083
        %v1093 = vcombine.low %v1074, %v1090
        %v1094 = vcombine.high %v1074, %v1090
        %v1095 = vpack.c.bf16 %v1091, %v1091
        %v1096 = vpack.c.bf16 %v1092, %v1092
        %v1097 = vpack.c.bf16 %v1093, %v1093
        %v1098 = vpack.c.bf16 %v1094, %v1094
        %1099 = vrot.lane.b32.xlu0 %v796, 64
        %v1100 = vpop.permute.xlu0 %1099
        %1101 = vrot.lane.b32.xlu0 %v803, 64
        %v1102 = vpop.permute.xlu0 %1101
        %1103 = vrot.lane.b32.xlu0 %v806, 64
        %v1104 = vpop.permute.xlu0 %1103
        %1105 = vrot.lane.b32.xlu0 %v809, 64
        %v1106 = vpop.permute.xlu0 %1105
        %v1111 = vcombine.low %v1100, %v1104
        %v1112 = vcombine.high %v1100, %v1104
        %v1114 = vunpack.c.l.s4 1983009808
        %v1115 = vunpack.c.0.s8 %v1114
        %v1116 = vlaneseq
        %v1117 = vshrl.u32 %v1116, 7
        %v1118 = vsub.s32 %v1115, %v1117
        %v1119 = vrot.slane %v1111, %v1118
        %v1121 = vunpack.c.l.s4 1983009808
        %v1122 = vunpack.c.0.s8 %v1121
        %v1123 = vlaneseq
        %v1124 = vshrl.u32 %v1123, 7
        %v1125 = vsub.s32 %v1122, %v1124
        %v1126 = vrot.slane %v1112, %v1125
        %v1127 = vcombine.low %v1102, %v1106
        %v1128 = vcombine.high %v1102, %v1106
        %v1130 = vunpack.c.l.s4 1983009808
        %v1131 = vunpack.c.0.s8 %v1130
        %v1132 = vlaneseq
        %v1133 = vshrl.u32 %v1132, 7
        %v1134 = vsub.s32 %v1131, %v1133
        %v1135 = vrot.slane %v1127, %v1134
        %v1137 = vunpack.c.l.s4 1983009808
        %v1138 = vunpack.c.0.s8 %v1137
        %v1139 = vlaneseq
        %v1140 = vshrl.u32 %v1139, 7
        %v1141 = vsub.s32 %v1138, %v1140
        %v1142 = vrot.slane %v1128, %v1141
        %v1143 = vcombine.low %v1119, %v1135
        %v1144 = vcombine.high %v1119, %v1135
        %v1146 = vunpack.c.l.s4 1934713408
        %v1147 = vunpack.c.0.s8 %v1146
        %v1148 = vlaneseq
        %v1149 = vshrl.u32 %v1148, 7
        %v1150 = vsub.s32 %v1147, %v1149
        %v1151 = vrot.slane %v1143, %v1150
        %v1153 = vunpack.c.l.s4 1934713408
        %v1154 = vunpack.c.0.s8 %v1153
        %v1155 = vlaneseq
        %v1156 = vshrl.u32 %v1155, 7
        %v1157 = vsub.s32 %v1154, %v1156
        %v1158 = vrot.slane %v1144, %v1157
        %v1159 = vcombine.low %v1126, %v1142
        %v1160 = vcombine.high %v1126, %v1142
        %v1162 = vunpack.c.l.s4 1934713408
        %v1163 = vunpack.c.0.s8 %v1162
        %v1164 = vlaneseq
        %v1165 = vshrl.u32 %v1164, 7
        %v1166 = vsub.s32 %v1163, %v1165
        %v1167 = vrot.slane %v1159, %v1166
        %v1169 = vunpack.c.l.s4 1934713408
        %v1170 = vunpack.c.0.s8 %v1169
        %v1171 = vlaneseq
        %v1172 = vshrl.u32 %v1171, 7
        %v1173 = vsub.s32 %v1170, %v1172
        %v1174 = vrot.slane %v1160, %v1173
        %v1175 = vcombine.high %v1151, 0.0
        %v1176 = vcombine.high %v1158, 0.0
        %v1177 = vcombine.high %v1167, 0.0
        %v1178 = vcombine.high %v1174, 0.0
        %v1179 = vcombine.low %v1151, %v1158
        %v1181 = vunpack.c.l.s4 1983009808
        %v1182 = vunpack.c.0.s8 %v1181
        %v1183 = vlaneseq
        %v1184 = vshrl.u32 %v1183, 7
        %v1185 = vsub.s32 %v1182, %v1184
        %v1186 = vrot.slane %v1179, %v1185
        %v1187 = vcombine.low %v1175, %v1176
        %v1189 = vunpack.c.l.s4 1983009808
        %v1190 = vunpack.c.0.s8 %v1189
        %v1191 = vlaneseq
        %v1192 = vshrl.u32 %v1191, 7
        %v1193 = vsub.s32 %v1190, %v1192
        %v1194 = vrot.slane %v1187, %v1193
        %v1195 = vcombine.low %v1167, %v1174
        %v1197 = vunpack.c.l.s4 1983009808
        %v1198 = vunpack.c.0.s8 %v1197
        %v1199 = vlaneseq
        %v1200 = vshrl.u32 %v1199, 7
        %v1201 = vsub.s32 %v1198, %v1200
        %v1202 = vrot.slane %v1195, %v1201
        %v1203 = vcombine.low %v1177, %v1178
        %v1205 = vunpack.c.l.s4 1983009808
        %v1206 = vunpack.c.0.s8 %v1205
        %v1207 = vlaneseq
        %v1208 = vshrl.u32 %v1207, 7
        %v1209 = vsub.s32 %v1206, %v1208
        %v1210 = vrot.slane %v1203, %v1209
        %v1211 = vcombine.low %v1186, %v1194
        %v1212 = vcombine.high %v1186, %v1194
        %v1214 = vunpack.c.l.s4 1934713408
        %v1215 = vunpack.c.0.s8 %v1214
        %v1216 = vlaneseq
        %v1217 = vshrl.u32 %v1216, 7
        %v1218 = vsub.s32 %v1215, %v1217
        %v1219 = vrot.slane %v1211, %v1218
        %v1221 = vunpack.c.l.s4 1934713408
        %v1222 = vunpack.c.0.s8 %v1221
        %v1223 = vlaneseq
        %v1224 = vshrl.u32 %v1223, 7
        %v1225 = vsub.s32 %v1222, %v1224
        %v1226 = vrot.slane %v1212, %v1225
        %v1227 = vcombine.low %v1202, %v1210
        %v1228 = vcombine.high %v1202, %v1210
        %v1230 = vunpack.c.l.s4 1934713408
        %v1231 = vunpack.c.0.s8 %v1230
        %v1232 = vlaneseq
        %v1233 = vshrl.u32 %v1232, 7
        %v1234 = vsub.s32 %v1231, %v1233
        %v1235 = vrot.slane %v1227, %v1234
        %v1237 = vunpack.c.l.s4 1934713408
        %v1238 = vunpack.c.0.s8 %v1237
        %v1239 = vlaneseq
        %v1240 = vshrl.u32 %v1239, 7
        %v1241 = vsub.s32 %v1238, %v1240
        %v1242 = vrot.slane %v1228, %v1241
        %v1243 = vcombine.low %v1219, %v1235
        %v1244 = vcombine.high %v1219, %v1235
        %v1245 = vcombine.low %v1226, %v1242
        %v1246 = vcombine.high %v1226, %v1242
        %v1247 = vpack.c.bf16 %v1243, %v1243
        %v1248 = vpack.c.bf16 %v1244, %v1244
        %v1249 = vpack.c.bf16 %v1245, %v1245
        %v1250 = vpack.c.bf16 %v1246, %v1246
        %v1251 = vlaneseq
        %v1252 = vshrl.u32 %v1251, 7
        %v1253 = vlaneseq
        %v1254 = vand.u32 %v1253, 127
        %v1255 = vpack.c.bf16 %v943, %v943
        %v1256 = vpack.c.bf16 %v944, %v944
        %v1257 = vpack.c.bf16 %v945, %v945
        %v1258 = vpack.c.bf16 %v946, %v946
        %vm1259 = vcmask 64512
        %v1261 = vsel %vm1259, %v1255, 0
        %v1264 = vsel %vm1259, %v1095, 0
        %1266 = vmatprep.subr.bf16.mxu0 0
        %1267 = vmatpush1.bf16.xpose.msra.mxu0 %v1264
        %1268 = vmatprep.subr.bf16.mxu0 0
        %1269 = vmatpush1.bf16.xpose.msra.mxu0 0
        %1270 = vmatprep.subr.bf16.mxu0 0
        %1271 = vmatpush1.bf16.xpose.msra.mxu0 0
        %1272 = vmatprep.subr.bf16.mxu0 0
        %1273 = vmatpush1.bf16.xpose.msra.mxu0 0
        %1274 = vmatprep.subr.bf16.mxu0 0
        %1275 = vmatpush1.bf16.xpose.msra.mxu0 0
        %1276 = vmatprep.subr.bf16.mxu0 0
        %1277 = vmatpush1.bf16.xpose.msra.mxu0 0
        %1278 = vmatprep.subr.bf16.mxu0 0
        %1279 = vmatpush1.bf16.xpose.msra.mxu0 0
        %1280 = vmatprep.subr.bf16.mxu0 0
        %1281 = vmatpush1.bf16.xpose.msra.mxu0 0
        %1282 = vmatprep.subr.bf16.mxu0 0
        %1283 = vmatpush1.bf16.xpose.msra.mxu0 0
        %1284 = vmatprep.subr.bf16.mxu0 0
        %1285 = vmatpush1.bf16.xpose.msra.mxu0 0
        %1286 = vmatprep.subr.bf16.mxu0 0
        %1287 = vmatpush1.bf16.xpose.msra.mxu0 0
        %1288 = vmatprep.subr.bf16.mxu0 0
        %1289 = vmatpush1.bf16.xpose.msra.mxu0 0
        %1290 = vmatprep.subr.bf16.mxu0 0
        %1291 = vmatpush1.bf16.xpose.msra.mxu0 0
        %1292 = vmatprep.subr.bf16.mxu0 0
        %1293 = vmatpush1.bf16.xpose.msra.mxu0 0
        %1294 = vmatprep.subr.bf16.mxu0 0
        %1295 = vmatpush1.bf16.xpose.msra.mxu0 0
        %1296 = vmatprep.subr.bf16.mxu0 0
        %1297 = vmatpush1.bf16.xpose.msra.mxu0 0
        %1298 = vmatprep.mubr.bf16.mxu0 0
        %1299 = vmatmul.mubr.bf16.gmra.mrb[0].mxu0 %v1261
        %v1300 = vpop.f32.mrb[0].mxu0
        %v1301 = vadd.f32 0.0, %v1300
        %v1302 = vpop.f32.mrb[0].mxu0
        %v1303 = vpop.f32.mrb[0].mxu0
        %v1304 = vpop.f32.mrb[0].mxu0
        %1305 = vdwg.mxu0
        %v1307 = vsel %vm1259, %v1256, 0
        %v1310 = vsel %vm1259, %v1096, 0
        %1312 = vmatprep.subr.bf16.mxu0 0
        %1313 = vmatpush1.bf16.xpose.msra.mxu0 %v1310
        %1314 = vmatprep.subr.bf16.mxu0 0
        %1315 = vmatpush1.bf16.xpose.msra.mxu0 0
        %1316 = vmatprep.subr.bf16.mxu0 0
        %1317 = vmatpush1.bf16.xpose.msra.mxu0 0
        %1318 = vmatprep.subr.bf16.mxu0 0
        %1319 = vmatpush1.bf16.xpose.msra.mxu0 0
        %1320 = vmatprep.subr.bf16.mxu0 0
        %1321 = vmatpush1.bf16.xpose.msra.mxu0 0
        %1322 = vmatprep.subr.bf16.mxu0 0
        %1323 = vmatpush1.bf16.xpose.msra.mxu0 0
        %1324 = vmatprep.subr.bf16.mxu0 0
        %1325 = vmatpush1.bf16.xpose.msra.mxu0 0
        %1326 = vmatprep.subr.bf16.mxu0 0
        %1327 = vmatpush1.bf16.xpose.msra.mxu0 0
        %1328 = vmatprep.subr.bf16.mxu0 0
        %1329 = vmatpush1.bf16.xpose.msra.mxu0 0
        %1330 = vmatprep.subr.bf16.mxu0 0
        %1331 = vmatpush1.bf16.xpose.msra.mxu0 0
        %1332 = vmatprep.subr.bf16.mxu0 0
        %1333 = vmatpush1.bf16.xpose.msra.mxu0 0
        %1334 = vmatprep.subr.bf16.mxu0 0
        %1335 = vmatpush1.bf16.xpose.msra.mxu0 0
        %1336 = vmatprep.subr.bf16.mxu0 0
        %1337 = vmatpush1.bf16.xpose.msra.mxu0 0
        %1338 = vmatprep.subr.bf16.mxu0 0
        %1339 = vmatpush1.bf16.xpose.msra.mxu0 0
        %1340 = vmatprep.subr.bf16.mxu0 0
        %1341 = vmatpush1.bf16.xpose.msra.mxu0 0
        %1342 = vmatprep.subr.bf16.mxu0 0
        %1343 = vmatpush1.bf16.xpose.msra.mxu0 0
        %1344 = vmatprep.mubr.bf16.mxu0 0
        %1345 = vmatmul.mubr.bf16.gmra.mrb[0].mxu0 %v1307
        %v1346 = vpop.f32.mrb[0].mxu0
        %v1347 = vadd.f32 0.0, %v1346
        %v1348 = vpop.f32.mrb[0].mxu0
        %v1349 = vpop.f32.mrb[0].mxu0
        %v1350 = vpop.f32.mrb[0].mxu0
        %1351 = vdwg.mxu0
        %v1353 = vsel %vm1259, %v1257, 0
        %v1356 = vsel %vm1259, %v1097, 0
        %1358 = vmatprep.subr.bf16.mxu0 0
        %1359 = vmatpush1.bf16.xpose.msra.mxu0 %v1356
        %1360 = vmatprep.subr.bf16.mxu0 0
        %1361 = vmatpush1.bf16.xpose.msra.mxu0 0
        %1362 = vmatprep.subr.bf16.mxu0 0
        %1363 = vmatpush1.bf16.xpose.msra.mxu0 0
        %1364 = vmatprep.subr.bf16.mxu0 0
        %1365 = vmatpush1.bf16.xpose.msra.mxu0 0
        %1366 = vmatprep.subr.bf16.mxu0 0
        %1367 = vmatpush1.bf16.xpose.msra.mxu0 0
        %1368 = vmatprep.subr.bf16.mxu0 0
        %1369 = vmatpush1.bf16.xpose.msra.mxu0 0
        %1370 = vmatprep.subr.bf16.mxu0 0
        %1371 = vmatpush1.bf16.xpose.msra.mxu0 0
        %1372 = vmatprep.subr.bf16.mxu0 0
        %1373 = vmatpush1.bf16.xpose.msra.mxu0 0
        %1374 = vmatprep.subr.bf16.mxu0 0
        %1375 = vmatpush1.bf16.xpose.msra.mxu0 0
        %1376 = vmatprep.subr.bf16.mxu0 0
        %1377 = vmatpush1.bf16.xpose.msra.mxu0 0
        %1378 = vmatprep.subr.bf16.mxu0 0
        %1379 = vmatpush1.bf16.xpose.msra.mxu0 0
        %1380 = vmatprep.subr.bf16.mxu0 0
        %1381 = vmatpush1.bf16.xpose.msra.mxu0 0
        %1382 = vmatprep.subr.bf16.mxu0 0
        %1383 = vmatpush1.bf16.xpose.msra.mxu0 0
        %1384 = vmatprep.subr.bf16.mxu0 0
        %1385 = vmatpush1.bf16.xpose.msra.mxu0 0
        %1386 = vmatprep.subr.bf16.mxu0 0
        %1387 = vmatpush1.bf16.xpose.msra.mxu0 0
        %1388 = vmatprep.subr.bf16.mxu0 0
        %1389 = vmatpush1.bf16.xpose.msra.mxu0 0
        %1390 = vmatprep.mubr.bf16.mxu0 0
        %1391 = vmatmul.mubr.bf16.gmra.mrb[0].mxu0 %v1353
        %v1392 = vpop.f32.mrb[0].mxu0
        %v1393 = vadd.f32 0.0, %v1392
        %v1394 = vpop.f32.mrb[0].mxu0
        %v1395 = vpop.f32.mrb[0].mxu0
        %v1396 = vpop.f32.mrb[0].mxu0
        %1397 = vdwg.mxu0
        %v1399 = vsel %vm1259, %v1258, 0
        %v1402 = vsel %vm1259, %v1098, 0
        %1404 = vmatprep.subr.bf16.mxu0 0
        %1405 = vmatpush1.bf16.xpose.msra.mxu0 %v1402
        %1406 = vmatprep.subr.bf16.mxu0 0
        %1407 = vmatpush1.bf16.xpose.msra.mxu0 0
        %1408 = vmatprep.subr.bf16.mxu0 0
        %1409 = vmatpush1.bf16.xpose.msra.mxu0 0
        %1410 = vmatprep.subr.bf16.mxu0 0
        %1411 = vmatpush1.bf16.xpose.msra.mxu0 0
        %1412 = vmatprep.subr.bf16.mxu0 0
        %1413 = vmatpush1.bf16.xpose.msra.mxu0 0
        %1414 = vmatprep.subr.bf16.mxu0 0
        %1415 = vmatpush1.bf16.xpose.msra.mxu0 0
        %1416 = vmatprep.subr.bf16.mxu0 0
        %1417 = vmatpush1.bf16.xpose.msra.mxu0 0
        %1418 = vmatprep.subr.bf16.mxu0 0
        %1419 = vmatpush1.bf16.xpose.msra.mxu0 0
        %1420 = vmatprep.subr.bf16.mxu0 0
        %1421 = vmatpush1.bf16.xpose.msra.mxu0 0
        %1422 = vmatprep.subr.bf16.mxu0 0
        %1423 = vmatpush1.bf16.xpose.msra.mxu0 0
        %1424 = vmatprep.subr.bf16.mxu0 0
        %1425 = vmatpush1.bf16.xpose.msra.mxu0 0
        %1426 = vmatprep.subr.bf16.mxu0 0
        %1427 = vmatpush1.bf16.xpose.msra.mxu0 0
        %1428 = vmatprep.subr.bf16.mxu0 0
        %1429 = vmatpush1.bf16.xpose.msra.mxu0 0
        %1430 = vmatprep.subr.bf16.mxu0 0
        %1431 = vmatpush1.bf16.xpose.msra.mxu0 0
        %1432 = vmatprep.subr.bf16.mxu0 0
        %1433 = vmatpush1.bf16.xpose.msra.mxu0 0
        %1434 = vmatprep.subr.bf16.mxu0 0
        %1435 = vmatpush1.bf16.xpose.msra.mxu0 0
        %1436 = vmatprep.mubr.bf16.mxu0 0
        %1437 = vmatmul.mubr.bf16.gmra.mrb[0].mxu0 %v1399
        %v1438 = vpop.f32.mrb[0].mxu0
        %v1439 = vadd.f32 0.0, %v1438
        %v1440 = vpop.f32.mrb[0].mxu0
        %v1441 = vpop.f32.mrb[0].mxu0
        %v1442 = vpop.f32.mrb[0].mxu0
        %1443 = vdwg.mxu0
        %v1444 = vmul.f32 %v1301, 0.35355338
        %v1445 = vmul.f32 %v1347, 0.35355338
        %v1446 = vmul.f32 %v1393, 0.35355338
        %v1447 = vmul.f32 %v1439, 0.35355338
        %vm1448 = vcmp.le.s32.totalorder %v1254, %v1252
        %v1449 = vsel %vm1448, 1, 0
        %vm1450 = vcmp.eq.s32.totalorder %v1449, 1
        %v1451 = vsel %vm1450, %v1444, 0.0
        %v1452 = vsel %vm1450, %v1445, 0.0
        %v1453 = vsel %vm1450, %v1446, 0.0
        %v1454 = vsel %vm1450, %v1447, 0.0
        %v1455 = vsel %vm1259, %v1451, -inf
        %1456 = vmax.xlane.f32.xlu0 %v1455
        %v1457 = vpop.xlane.xlu0 %1456
        %v1458 = vsel %vm1259, %v1452, -inf
        %1459 = vmax.xlane.f32.xlu0 %v1458
        %v1460 = vpop.xlane.xlu0 %1459
        %v1461 = vsel %vm1259, %v1453, -inf
        %1462 = vmax.xlane.f32.xlu0 %v1461
        %v1463 = vpop.xlane.xlu0 %1462
        %v1464 = vsel %vm1259, %v1454, -inf
        %1465 = vmax.xlane.f32.xlu0 %v1464
        %v1466 = vpop.xlane.xlu0 %1465
        %v1467 = vsub.f32 -inf, %v1457
        %v1468 = vsub.f32 -inf, %v1460
        %v1469 = vsub.f32 -inf, %v1463
        %v1470 = vsub.f32 -inf, %v1466
        %v1471 = vmul.f32 %v1467, 1.442695
        %v1472 = vpow.pop %v1471
        %v1473 = vmul.f32 %v1468, 1.442695
        %v1474 = vpow.pop %v1473
        %v1475 = vmul.f32 %v1469, 1.442695
        %v1476 = vpow.pop %v1475
        %v1477 = vmul.f32 %v1470, 1.442695
        %v1478 = vpow.pop %v1477
        %v1479 = vsub.f32 %v1451, %v1457
        %v1480 = vsub.f32 %v1452, %v1460
        %v1481 = vsub.f32 %v1453, %v1463
        %v1482 = vsub.f32 %v1454, %v1466
        %v1483 = vmul.f32 %v1479, 1.442695
        %v1484 = vpow.pop %v1483
        %v1485 = vmul.f32 %v1480, 1.442695
        %v1486 = vpow.pop %v1485
        %v1487 = vmul.f32 %v1481, 1.442695
        %v1488 = vpow.pop %v1487
        %v1489 = vmul.f32 %v1482, 1.442695
        %v1490 = vpow.pop %v1489
        %v1491 = vmul.f32 %v1472, 0.0
        %v1492 = vmul.f32 %v1474, 0.0
        %v1493 = vmul.f32 %v1476, 0.0
        %v1494 = vmul.f32 %v1478, 0.0
        %v1495 = vsel %vm1259, %v1484, 0.0
        %1496 = vadd.xlane.f32.xlu0 %v1495
        %v1497 = vpop.xlane.xlu0 %1496
        %v1498 = vsel %vm1259, %v1486, 0.0
        %1499 = vadd.xlane.f32.xlu0 %v1498
        %v1500 = vpop.xlane.xlu0 %1499
        %v1501 = vsel %vm1259, %v1488, 0.0
        %1502 = vadd.xlane.f32.xlu0 %v1501
        %v1503 = vpop.xlane.xlu0 %1502
        %v1504 = vsel %vm1259, %v1490, 0.0
        %1505 = vadd.xlane.f32.xlu0 %v1504
        %v1506 = vpop.xlane.xlu0 %1505
        %v1507 = vadd.f32 %v1491, %v1497
        %v1508 = vadd.f32 %v1492, %v1500
        %v1509 = vadd.f32 %v1493, %v1503
        %v1510 = vadd.f32 %v1494, %v1506
        %v1511 = vpack.c.bf16 %v1484, %v1484
        %v1512 = vpack.c.bf16 %v1486, %v1486
        %v1513 = vpack.c.bf16 %v1488, %v1488
        %v1514 = vpack.c.bf16 %v1490, %v1490
        %v1516 = vsel %vm1259, %v1511, 0
        %vm1518 = vcmask 1043456
        %v1520 = vsel %vm1518, %v1247, 0
        %1522 = vmatprep.subr.bf16.mxu0 0
        %1523 = vmatpush1.bf16.msra.mxu0 %v1520
        %1524 = vmatprep.subr.bf16.mxu0 0
        %1525 = vmatpush1.bf16.msra.mxu0 0
        %1526 = vmatprep.subr.bf16.mxu0 0
        %1527 = vmatpush1.bf16.msra.mxu0 0
        %1528 = vmatprep.subr.bf16.mxu0 0
        %1529 = vmatpush1.bf16.msra.mxu0 0
        %1530 = vmatprep.subr.bf16.mxu0 0
        %1531 = vmatpush1.bf16.msra.mxu0 0
        %1532 = vmatprep.subr.bf16.mxu0 0
        %1533 = vmatpush1.bf16.msra.mxu0 0
        %1534 = vmatprep.subr.bf16.mxu0 0
        %1535 = vmatpush1.bf16.msra.mxu0 0
        %1536 = vmatprep.subr.bf16.mxu0 0
        %1537 = vmatpush1.bf16.msra.mxu0 0
        %1538 = vmatprep.subr.bf16.mxu0 0
        %1539 = vmatpush1.bf16.msra.mxu0 0
        %1540 = vmatprep.subr.bf16.mxu0 0
        %1541 = vmatpush1.bf16.msra.mxu0 0
        %1542 = vmatprep.subr.bf16.mxu0 0
        %1543 = vmatpush1.bf16.msra.mxu0 0
        %1544 = vmatprep.subr.bf16.mxu0 0
        %1545 = vmatpush1.bf16.msra.mxu0 0
        %1546 = vmatprep.subr.bf16.mxu0 0
        %1547 = vmatpush1.bf16.msra.mxu0 0
        %1548 = vmatprep.subr.bf16.mxu0 0
        %1549 = vmatpush1.bf16.msra.mxu0 0
        %1550 = vmatprep.subr.bf16.mxu0 0
        %1551 = vmatpush1.bf16.msra.mxu0 0
        %1552 = vmatprep.subr.bf16.mxu0 0
        %1553 = vmatpush1.bf16.msra.mxu0 0
        %1554 = vmatprep.mubr.bf16.mxu0 0
        %1555 = vmatmul.mubr.bf16.gmra.mrb[0].mxu0 %v1516
        %v1556 = vpop.f32.mrb[0].mxu0
        %v1557 = vadd.f32 0.0, %v1556
        %v1558 = vpop.f32.mrb[0].mxu0
        %v1559 = vpop.f32.mrb[0].mxu0
        %v1560 = vpop.f32.mrb[0].mxu0
        %1561 = vdwg.mxu0
        %v1563 = vsel %vm1259, %v1512, 0
        %v1566 = vsel %vm1518, %v1248, 0
        %1568 = vmatprep.subr.bf16.mxu0 0
        %1569 = vmatpush1.bf16.msra.mxu0 %v1566
        %1570 = vmatprep.subr.bf16.mxu0 0
        %1571 = vmatpush1.bf16.msra.mxu0 0
        %1572 = vmatprep.subr.bf16.mxu0 0
        %1573 = vmatpush1.bf16.msra.mxu0 0
        %1574 = vmatprep.subr.bf16.mxu0 0
        %1575 = vmatpush1.bf16.msra.mxu0 0
        %1576 = vmatprep.subr.bf16.mxu0 0
        %1577 = vmatpush1.bf16.msra.mxu0 0
        %1578 = vmatprep.subr.bf16.mxu0 0
        %1579 = vmatpush1.bf16.msra.mxu0 0
        %1580 = vmatprep.subr.bf16.mxu0 0
        %1581 = vmatpush1.bf16.msra.mxu0 0
        %1582 = vmatprep.subr.bf16.mxu0 0
        %1583 = vmatpush1.bf16.msra.mxu0 0
        %1584 = vmatprep.subr.bf16.mxu0 0
        %1585 = vmatpush1.bf16.msra.mxu0 0
        %1586 = vmatprep.subr.bf16.mxu0 0
        %1587 = vmatpush1.bf16.msra.mxu0 0
        %1588 = vmatprep.subr.bf16.mxu0 0
        %1589 = vmatpush1.bf16.msra.mxu0 0
        %1590 = vmatprep.subr.bf16.mxu0 0
        %1591 = vmatpush1.bf16.msra.mxu0 0
        %1592 = vmatprep.subr.bf16.mxu0 0
        %1593 = vmatpush1.bf16.msra.mxu0 0
        %1594 = vmatprep.subr.bf16.mxu0 0
        %1595 = vmatpush1.bf16.msra.mxu0 0
        %1596 = vmatprep.subr.bf16.mxu0 0
        %1597 = vmatpush1.bf16.msra.mxu0 0
        %1598 = vmatprep.subr.bf16.mxu0 0
        %1599 = vmatpush1.bf16.msra.mxu0 0
        %1600 = vmatprep.mubr.bf16.mxu0 0
        %1601 = vmatmul.mubr.bf16.gmra.mrb[0].mxu0 %v1563
        %v1602 = vpop.f32.mrb[0].mxu0
        %v1603 = vadd.f32 0.0, %v1602
        %v1604 = vpop.f32.mrb[0].mxu0
        %v1605 = vpop.f32.mrb[0].mxu0
        %v1606 = vpop.f32.mrb[0].mxu0
        %1607 = vdwg.mxu0
        %v1609 = vsel %vm1259, %v1513, 0
        %v1612 = vsel %vm1518, %v1249, 0
        %1614 = vmatprep.subr.bf16.mxu0 0
        %1615 = vmatpush1.bf16.msra.mxu0 %v1612
        %1616 = vmatprep.subr.bf16.mxu0 0
        %1617 = vmatpush1.bf16.msra.mxu0 0
        %1618 = vmatprep.subr.bf16.mxu0 0
        %1619 = vmatpush1.bf16.msra.mxu0 0
        %1620 = vmatprep.subr.bf16.mxu0 0
        %1621 = vmatpush1.bf16.msra.mxu0 0
        %1622 = vmatprep.subr.bf16.mxu0 0
        %1623 = vmatpush1.bf16.msra.mxu0 0
        %1624 = vmatprep.subr.bf16.mxu0 0
        %1625 = vmatpush1.bf16.msra.mxu0 0
        %1626 = vmatprep.subr.bf16.mxu0 0
        %1627 = vmatpush1.bf16.msra.mxu0 0
        %1628 = vmatprep.subr.bf16.mxu0 0
        %1629 = vmatpush1.bf16.msra.mxu0 0
        %1630 = vmatprep.subr.bf16.mxu0 0
        %1631 = vmatpush1.bf16.msra.mxu0 0
        %1632 = vmatprep.subr.bf16.mxu0 0
        %1633 = vmatpush1.bf16.msra.mxu0 0
        %1634 = vmatprep.subr.bf16.mxu0 0
        %1635 = vmatpush1.bf16.msra.mxu0 0
        %1636 = vmatprep.subr.bf16.mxu0 0
        %1637 = vmatpush1.bf16.msra.mxu0 0
        %1638 = vmatprep.subr.bf16.mxu0 0
        %1639 = vmatpush1.bf16.msra.mxu0 0
        %1640 = vmatprep.subr.bf16.mxu0 0
        %1641 = vmatpush1.bf16.msra.mxu0 0
        %1642 = vmatprep.subr.bf16.mxu0 0
        %1643 = vmatpush1.bf16.msra.mxu0 0
        %1644 = vmatprep.subr.bf16.mxu0 0
        %1645 = vmatpush1.bf16.msra.mxu0 0
        %1646 = vmatprep.mubr.bf16.mxu0 0
        %1647 = vmatmul.mubr.bf16.gmra.mrb[0].mxu0 %v1609
        %v1648 = vpop.f32.mrb[0].mxu0
        %v1649 = vadd.f32 0.0, %v1648
        %v1650 = vpop.f32.mrb[0].mxu0
        %v1651 = vpop.f32.mrb[0].mxu0
        %v1652 = vpop.f32.mrb[0].mxu0
        %1653 = vdwg.mxu0
        %v1655 = vsel %vm1259, %v1514, 0
        %v1658 = vsel %vm1518, %v1250, 0
        %1660 = vmatprep.subr.bf16.mxu0 0
        %1661 = vmatpush1.bf16.msra.mxu0 %v1658
        %1662 = vmatprep.subr.bf16.mxu0 0
        %1663 = vmatpush1.bf16.msra.mxu0 0
        %1664 = vmatprep.subr.bf16.mxu0 0
        %1665 = vmatpush1.bf16.msra.mxu0 0
        %1666 = vmatprep.subr.bf16.mxu0 0
        %1667 = vmatpush1.bf16.msra.mxu0 0
        %1668 = vmatprep.subr.bf16.mxu0 0
        %1669 = vmatpush1.bf16.msra.mxu0 0
        %1670 = vmatprep.subr.bf16.mxu0 0
        %1671 = vmatpush1.bf16.msra.mxu0 0
        %1672 = vmatprep.subr.bf16.mxu0 0
        %1673 = vmatpush1.bf16.msra.mxu0 0
        %1674 = vmatprep.subr.bf16.mxu0 0
        %1675 = vmatpush1.bf16.msra.mxu0 0
        %1676 = vmatprep.subr.bf16.mxu0 0
        %1677 = vmatpush1.bf16.msra.mxu0 0
        %1678 = vmatprep.subr.bf16.mxu0 0
        %1679 = vmatpush1.bf16.msra.mxu0 0
        %1680 = vmatprep.subr.bf16.mxu0 0
        %1681 = vmatpush1.bf16.msra.mxu0 0
        %1682 = vmatprep.subr.bf16.mxu0 0
        %1683 = vmatpush1.bf16.msra.mxu0 0
        %1684 = vmatprep.subr.bf16.mxu0 0
        %1685 = vmatpush1.bf16.msra.mxu0 0
        %1686 = vmatprep.subr.bf16.mxu0 0
        %1687 = vmatpush1.bf16.msra.mxu0 0
        %1688 = vmatprep.subr.bf16.mxu0 0
        %1689 = vmatpush1.bf16.msra.mxu0 0
        %1690 = vmatprep.subr.bf16.mxu0 0
        %1691 = vmatpush1.bf16.msra.mxu0 0
        %1692 = vmatprep.mubr.bf16.mxu0 0
        %1693 = vmatmul.mubr.bf16.gmra.mrb[0].mxu0 %v1655
        %v1694 = vpop.f32.mrb[0].mxu0
        %v1695 = vadd.f32 0.0, %v1694
        %v1696 = vpop.f32.mrb[0].mxu0
        %v1697 = vpop.f32.mrb[0].mxu0
        %v1698 = vpop.f32.mrb[0].mxu0
        %1699 = vdwg.mxu0
        %v1700 = vadd.f32 %v1491, %v1557
        %v1701 = vadd.f32 %v1492, %v1603
        %v1702 = vadd.f32 %v1493, %v1649
        %v1703 = vadd.f32 %v1494, %v1695
        %v1704 = vrcp.pop %v1507
        %v1705 = vrcp.pop %v1508
        %v1706 = vrcp.pop %v1509
        %v1707 = vrcp.pop %v1510
        %v1708 = vmul.f32 %v1700, %v1704
        %v1709 = vmul.f32 %v1701, %v1705
        %v1710 = vmul.f32 %v1702, %v1706
        %v1711 = vmul.f32 %v1703, %v1707
        %v1712 = vcombine.low %v1708, %v1710
        %v1713 = vcombine.high %v1708, %v1710
        %v1715 = vunpack.c.l.s4 1983009808
        %v1716 = vunpack.c.0.s8 %v1715
        %v1717 = vlaneseq
        %v1718 = vshrl.u32 %v1717, 7
        %v1719 = vsub.s32 %v1716, %v1718
        %v1720 = vrot.slane %v1712, %v1719
        %v1722 = vunpack.c.l.s4 1983009808
        %v1723 = vunpack.c.0.s8 %v1722
        %v1724 = vlaneseq
        %v1725 = vshrl.u32 %v1724, 7
        %v1726 = vsub.s32 %v1723, %v1725
        %v1727 = vrot.slane %v1713, %v1726
        %v1728 = vcombine.low %v1709, %v1711
        %v1729 = vcombine.high %v1709, %v1711
        %v1731 = vunpack.c.l.s4 1983009808
        %v1732 = vunpack.c.0.s8 %v1731
        %v1733 = vlaneseq
        %v1734 = vshrl.u32 %v1733, 7
        %v1735 = vsub.s32 %v1732, %v1734
        %v1736 = vrot.slane %v1728, %v1735
        %v1738 = vunpack.c.l.s4 1983009808
        %v1739 = vunpack.c.0.s8 %v1738
        %v1740 = vlaneseq
        %v1741 = vshrl.u32 %v1740, 7
        %v1742 = vsub.s32 %v1739, %v1741
        %v1743 = vrot.slane %v1729, %v1742
        %v1744 = vcombine.low %v1720, %v1736
        %v1745 = vcombine.high %v1720, %v1736
        %v1747 = vunpack.c.l.s4 1934713408
        %v1748 = vunpack.c.0.s8 %v1747
        %v1749 = vlaneseq
        %v1750 = vshrl.u32 %v1749, 7
        %v1751 = vsub.s32 %v1748, %v1750
        %v1752 = vrot.slane %v1744, %v1751
        %v1754 = vunpack.c.l.s4 1934713408
        %v1755 = vunpack.c.0.s8 %v1754
        %v1756 = vlaneseq
        %v1757 = vshrl.u32 %v1756, 7
        %v1758 = vsub.s32 %v1755, %v1757
        %v1759 = vrot.slane %v1745, %v1758
        %v1760 = vcombine.low %v1727, %v1743
        %v1761 = vcombine.high %v1727, %v1743
        %v1763 = vunpack.c.l.s4 1934713408
        %v1764 = vunpack.c.0.s8 %v1763
        %v1765 = vlaneseq
        %v1766 = vshrl.u32 %v1765, 7
        %v1767 = vsub.s32 %v1764, %v1766
        %v1768 = vrot.slane %v1760, %v1767
        %v1770 = vunpack.c.l.s4 1934713408
        %v1771 = vunpack.c.0.s8 %v1770
        %v1772 = vlaneseq
        %v1773 = vshrl.u32 %v1772, 7
        %v1774 = vsub.s32 %v1771, %v1773
        %v1775 = vrot.slane %v1761, %v1774
        %v1776 = vcombine.high %v1752, 0.0
        %v1777 = vcombine.high %v1759, 0.0
        %v1778 = vcombine.high %v1768, 0.0
        %v1779 = vcombine.high %v1775, 0.0
        %v1780 = vcombine.low %v1752, %v1759
        %v1782 = vunpack.c.l.s4 1983009808
        %v1783 = vunpack.c.0.s8 %v1782
        %v1784 = vlaneseq
        %v1785 = vshrl.u32 %v1784, 7
        %v1786 = vsub.s32 %v1783, %v1785
        %v1787 = vrot.slane %v1780, %v1786
        %v1788 = vcombine.low %v1776, %v1777
        %v1790 = vunpack.c.l.s4 1983009808
        %v1791 = vunpack.c.0.s8 %v1790
        %v1792 = vlaneseq
        %v1793 = vshrl.u32 %v1792, 7
        %v1794 = vsub.s32 %v1791, %v1793
        %v1795 = vrot.slane %v1788, %v1794
        %v1796 = vcombine.low %v1768, %v1775
        %v1798 = vunpack.c.l.s4 1983009808
        %v1799 = vunpack.c.0.s8 %v1798
        %v1800 = vlaneseq
        %v1801 = vshrl.u32 %v1800, 7
        %v1802 = vsub.s32 %v1799, %v1801
        %v1803 = vrot.slane %v1796, %v1802
        %v1804 = vcombine.low %v1778, %v1779
        %v1806 = vunpack.c.l.s4 1983009808
        %v1807 = vunpack.c.0.s8 %v1806
        %v1808 = vlaneseq
        %v1809 = vshrl.u32 %v1808, 7
        %v1810 = vsub.s32 %v1807, %v1809
        %v1811 = vrot.slane %v1804, %v1810
        %v1812 = vcombine.low %v1787, %v1795
        %v1813 = vcombine.high %v1787, %v1795
        %v1815 = vunpack.c.l.s4 1934713408
        %v1816 = vunpack.c.0.s8 %v1815
        %v1817 = vlaneseq
        %v1818 = vshrl.u32 %v1817, 7
        %v1819 = vsub.s32 %v1816, %v1818
        %v1820 = vrot.slane %v1812, %v1819
        %v1822 = vunpack.c.l.s4 1934713408
        %v1823 = vunpack.c.0.s8 %v1822
        %v1824 = vlaneseq
        %v1825 = vshrl.u32 %v1824, 7
        %v1826 = vsub.s32 %v1823, %v1825
        %v1827 = vrot.slane %v1813, %v1826
        %v1828 = vcombine.low %v1803, %v1811
        %v1829 = vcombine.high %v1803, %v1811
        %v1831 = vunpack.c.l.s4 1934713408
        %v1832 = vunpack.c.0.s8 %v1831
        %v1833 = vlaneseq
        %v1834 = vshrl.u32 %v1833, 7
        %v1835 = vsub.s32 %v1832, %v1834
        %v1836 = vrot.slane %v1828, %v1835
        %v1838 = vunpack.c.l.s4 1934713408
        %v1839 = vunpack.c.0.s8 %v1838
        %v1840 = vlaneseq
        %v1841 = vshrl.u32 %v1840, 7
        %v1842 = vsub.s32 %v1839, %v1841
        %v1843 = vrot.slane %v1829, %v1842
        %v1844 = vcombine.low %v1820, %v1836
        %v1845 = vcombine.high %v1820, %v1836
        %v1846 = vcombine.low %v1827, %v1843
        %v1847 = vcombine.high %v1827, %v1843
        %1849 = vrot.lane.b32.xlu0 %v1845, 8
        %v1850 = vpop.permute.xlu0 %1849
        %1853 = vrot.lane.b32.xlu0 %v1846, 16
        %v1854 = vpop.permute.xlu0 %1853
        %1857 = vrot.lane.b32.xlu0 %v1847, 24
        %v1858 = vpop.permute.xlu0 %1857
        %v1860 = vsel %vm1259, %v1844, %v1850
        %vm1861 = vcmask 130048
        %v1862 = vsel %vm1861, %v1860, %v1854
        %vm1863 = vcmask 195584
        %v1864 = vsel %vm1863, %v1862, %v1858
        %v1865 = vpack.c.bf16 %v1864, %v1864
        %v1866 = vld [vmem:[%s668] sm:$0xf]
        %v1867 = vld [vmem:[%s668 + $0x4] sm:$0xf]
        %v1868 = vld [vmem:[%s668 + $0x8] sm:$0xf]
        %v1869 = vld [vmem:[%s668 + $0xc] sm:$0xf]
        %v1870 = vld [vmem:[%s671] sm:$0x1]
        %v1872 = vlaneseq
        %v1873 = vshrl.u32 %v1872, 7
        %v1874 = vsub.s32 0, %v1873
        %v1875 = vrot.slane %v1870, %v1874
        %v1881 = vunpack.c.l.b16 %v1866
        %v1882 = vunpack.c.l.b16 %v1867
        %v1883 = vunpack.c.l.b16 %v1868
        %v1884 = vunpack.c.l.b16 %v1869
        %v1885 = vpack.c.b16 %v1882, %v1881
        %v1886 = vpack.c.b16 %v1884, %v1883
        %v1890 = vsel %vm705, %v1865, 0
        %1892 = vmatprep.subr.bf16.mxu0 0
        %1893 = vmatpush1.bf16.msra.mxu0 %v1885
        %1894 = vmatprep.subr.bf16.mxu0 0
        %1895 = vmatpush1.bf16.msra.mxu0 %v1886
        %1896 = vmatprep.subr.bf16.mxu0 0
        %1897 = vmatpush1.bf16.msra.mxu0 0
        %1898 = vmatprep.subr.bf16.mxu0 0
        %1899 = vmatpush1.bf16.msra.mxu0 0
        %1900 = vmatprep.subr.bf16.mxu0 0
        %1901 = vmatpush1.bf16.msra.mxu0 0
        %1902 = vmatprep.subr.bf16.mxu0 0
        %1903 = vmatpush1.bf16.msra.mxu0 0
        %1904 = vmatprep.subr.bf16.mxu0 0
        %1905 = vmatpush1.bf16.msra.mxu0 0
        %1906 = vmatprep.subr.bf16.mxu0 0
        %1907 = vmatpush1.bf16.msra.mxu0 0
        %1908 = vmatprep.subr.bf16.mxu0 0
        %1909 = vmatpush1.bf16.msra.mxu0 0
        %1910 = vmatprep.subr.bf16.mxu0 0
        %1911 = vmatpush1.bf16.msra.mxu0 0
        %1912 = vmatprep.subr.bf16.mxu0 0
        %1913 = vmatpush1.bf16.msra.mxu0 0
        %1914 = vmatprep.subr.bf16.mxu0 0
        %1915 = vmatpush1.bf16.msra.mxu0 0
        %1916 = vmatprep.subr.bf16.mxu0 0
        %1917 = vmatpush1.bf16.msra.mxu0 0
        %1918 = vmatprep.subr.bf16.mxu0 0
        %1919 = vmatpush1.bf16.msra.mxu0 0
        %1920 = vmatprep.subr.bf16.mxu0 0
        %1921 = vmatpush1.bf16.msra.mxu0 0
        %1922 = vmatprep.subr.bf16.mxu0 0
        %1923 = vmatpush1.bf16.msra.mxu0 0
        %1924 = vmatprep.mubr.bf16.mxu0 0
        %1925 = vmatmul.mubr.bf16.gmra.mrb[0].mxu0 %v1890
        %v1926 = vpop.f32.mrb[0].mxu0
        %v1927 = vadd.f32 %v1875, %v1926
        %v1928 = vpop.f32.mrb[0].mxu0
        %v1929 = vpop.f32.mrb[0].mxu0
        %v1930 = vpop.f32.mrb[0].mxu0
        %1931 = vdwg.mxu0
        %v1932 = vadd.f32 %v702, %v1927
        %v1933 = vld [vmem:[%s674] sm:$0x1]
        %v1934 = vld [vmem:[%s677] sm:$0x1]
        %v1935 = vsel %vm705, %v1932, 0.0
        %1936 = vadd.xlane.f32.xlu0 %v1935
        %v1937 = vpop.xlane.xlu0 %1936
        %v1938 = vmul.f32 %v1937, %v709
        %v1939 = vsub.f32 %v1932, %v1938
        %v1940 = vmul.f32 %v1939, %v1939
        %v1941 = vsel %vm705, %v1940, 0.0
        %1942 = vadd.xlane.f32.xlu0 %v1941
        %v1943 = vpop.xlane.xlu0 %1942
        %v1944 = vmul.f32 %v1943, %v709
        %v1945 = vadd.f32 %v1944, 1e-05
        %v1946 = vrsqrt.pop %v1945
        %v1947 = vmul.f32 %v1939, %v1946
        %v1949 = vlaneseq
        %v1950 = vshrl.u32 %v1949, 7
        %v1951 = vsub.s32 0, %v1950
        %v1952 = vrot.slane %v1933, %v1951
        %v1954 = vmul.f32 %v1947, %v1952
        %v1956 = vlaneseq
        %v1957 = vshrl.u32 %v1956, 7
        %v1958 = vsub.s32 0, %v1957
        %v1959 = vrot.slane %v1934, %v1958
        %v1961 = vadd.f32 %v1954, %v1959
        %v1962 = vpack.c.bf16 %v1961, %v1961
        %v1963 = vld [vmem:[%s682] sm:$0xf]
        %v1964 = vld [vmem:[%s682 + $0x4] sm:$0xf]
        %v1965 = vld [vmem:[%s682 + $0x8] sm:$0xf]
        %v1966 = vld [vmem:[%s682 + $0xc] sm:$0xf]
        %v1967 = vld [vmem:[%s685] sm:$0x1]
        %v1969 = vlaneseq
        %v1970 = vshrl.u32 %v1969, 7
        %v1971 = vsub.s32 0, %v1970
        %v1972 = vrot.slane %v1967, %v1971
        %v1978 = vunpack.c.l.b16 %v1963
        %v1979 = vunpack.c.l.b16 %v1964
        %v1980 = vunpack.c.l.b16 %v1965
        %v1981 = vunpack.c.l.b16 %v1966
        %v1982 = vpack.c.b16 %v1979, %v1978
        %v1983 = vpack.c.b16 %v1981, %v1980
        %v1987 = vsel %vm705, %v1962, 0
        %1989 = vmatprep.subr.bf16.mxu0 0
        %1990 = vmatpush1.bf16.msra.mxu0 %v1982
        %1991 = vmatprep.subr.bf16.mxu0 0
        %1992 = vmatpush1.bf16.msra.mxu0 %v1983
        %1993 = vmatprep.subr.bf16.mxu0 0
        %1994 = vmatpush1.bf16.msra.mxu0 0
        %1995 = vmatprep.subr.bf16.mxu0 0
        %1996 = vmatpush1.bf16.msra.mxu0 0
        %1997 = vmatprep.subr.bf16.mxu0 0
        %1998 = vmatpush1.bf16.msra.mxu0 0
        %1999 = vmatprep.subr.bf16.mxu0 0
        %2000 = vmatpush1.bf16.msra.mxu0 0
        %2001 = vmatprep.subr.bf16.mxu0 0
        %2002 = vmatpush1.bf16.msra.mxu0 0
        %2003 = vmatprep.subr.bf16.mxu0 0
        %2004 = vmatpush1.bf16.msra.mxu0 0
        %2005 = vmatprep.subr.bf16.mxu0 0
        %2006 = vmatpush1.bf16.msra.mxu0 0
        %2007 = vmatprep.subr.bf16.mxu0 0
        %2008 = vmatpush1.bf16.msra.mxu0 0
        %2009 = vmatprep.subr.bf16.mxu0 0
        %2010 = vmatpush1.bf16.msra.mxu0 0
        %2011 = vmatprep.subr.bf16.mxu0 0
        %2012 = vmatpush1.bf16.msra.mxu0 0
        %2013 = vmatprep.subr.bf16.mxu0 0
        %2014 = vmatpush1.bf16.msra.mxu0 0
        %2015 = vmatprep.subr.bf16.mxu0 0
        %2016 = vmatpush1.bf16.msra.mxu0 0
        %2017 = vmatprep.subr.bf16.mxu0 0
        %2018 = vmatpush1.bf16.msra.mxu0 0
        %2019 = vmatprep.subr.bf16.mxu0 0
        %2020 = vmatpush1.bf16.msra.mxu0 0
        %2021 = vmatprep.mubr.bf16.mxu0 0
        %2022 = vmatmul.mubr.bf16.gmra.mrb[0].mxu0 %v1987
        %v2023 = vpop.f32.mrb[0].mxu0
        %v2024 = vadd.f32 %v1972, %v2023
        %v2025 = vpop.f32.mrb[0].mxu0
        %v2026 = vpop.f32.mrb[0].mxu0
        %v2027 = vpop.f32.mrb[0].mxu0
        %2028 = vdwg.mxu0
        %v2029 = vmul.f32 %v2024, 0.5
        %v2030 = vmul.f32 %v2024, 0.70710677
        %vm2031 = vcmp.ge.f32.partialorder %v2030, 0.0
        %v2032 = vsel %vm2031, 1.0, -1.0
        %v2033 = vand.u32 2147483647, %v2030
        %v2034 = vmul.f32 %v2033, 0.3275911
        %v2035 = vadd.f32 %v2034, 1.0
        %v2036 = vrcp.pop %v2035
        %v2037 = vmul.f32 1.0, %v2036
        %v2038 = vmul.f32 %v2037, 1.0614054
        %v2039 = vadd.f32 %v2038, -1.4531521
        %v2040 = vmul.f32 %v2039, %v2037
        %v2041 = vadd.f32 %v2040, 1.4214138
        %v2042 = vmul.f32 %v2041, %v2037
        %v2043 = vadd.f32 %v2042, -0.28449672
        %v2044 = vmul.f32 %v2043, %v2037
        %v2045 = vadd.f32 %v2044, 0.2548296
        %v2046 = vmul.f32 %v2045, %v2037
        %v2047 = vsub.f32 0.0, %v2033
        %v2048 = vmul.f32 %v2047, %v2033
        %v2049 = vmul.f32 %v2048, 1.442695
        %v2050 = vpow.pop %v2049
        %v2051 = vmul.f32 %v2046, %v2050
        %v2052 = vsub.f32 1.0, %v2051
        %v2053 = vmul.f32 %v2032, %v2052
        %v2054 = vadd.f32 %v2053, 1.0
        %v2055 = vmul.f32 %v2029, %v2054
        %v2056 = vpack.c.bf16 %v2055, %v2055
        %v2057 = vld [vmem:[%s690] sm:$0xf]
        %v2058 = vld [vmem:[%s690 + $0x4] sm:$0xf]
        %v2059 = vld [vmem:[%s690 + $0x8] sm:$0xf]
        %v2060 = vld [vmem:[%s690 + $0xc] sm:$0xf]
        %v2061 = vld [vmem:[%s690 + $0x10] sm:$0xf]
        %v2062 = vld [vmem:[%s690 + $0x14] sm:$0xf]
        %v2063 = vld [vmem:[%s690 + $0x18] sm:$0xf]
        %v2064 = vld [vmem:[%s690 + $0x1c] sm:$0xf]
        %v2065 = vld [vmem:[%s690 + $0x20] sm:$0xf]
        %v2066 = vld [vmem:[%s690 + $0x24] sm:$0xf]
        %v2067 = vld [vmem:[%s690 + $0x28] sm:$0xf]
        %v2068 = vld [vmem:[%s690 + $0x2c] sm:$0xf]
        %v2069 = vld [vmem:[%s690 + $0x30] sm:$0xf]
        %v2070 = vld [vmem:[%s690 + $0x34] sm:$0xf]
        %v2071 = vld [vmem:[%s690 + $0x38] sm:$0xf]
        %v2072 = vld [vmem:[%s690 + $0x3c] sm:$0xf]
        %v2073 = vld [vmem:[%s693] sm:$0x1]
        %v2075 = vlaneseq
        %v2076 = vshrl.u32 %v2075, 7
        %v2077 = vsub.s32 0, %v2076
        %v2078 = vrot.slane %v2073, %v2077
        %v2096 = vunpack.c.l.b16 %v2057
        %v2097 = vunpack.c.l.b16 %v2058
        %v2098 = vunpack.c.l.b16 %v2059
        %v2099 = vunpack.c.l.b16 %v2060
        %v2100 = vunpack.c.l.b16 %v2061
        %v2101 = vunpack.c.l.b16 %v2062
        %v2102 = vunpack.c.l.b16 %v2063
        %v2103 = vunpack.c.l.b16 %v2064
        %v2104 = vunpack.c.l.b16 %v2065
        %v2105 = vunpack.c.l.b16 %v2066
        %v2106 = vunpack.c.l.b16 %v2067
        %v2107 = vunpack.c.l.b16 %v2068
        %v2108 = vunpack.c.l.b16 %v2069
        %v2109 = vunpack.c.l.b16 %v2070
        %v2110 = vunpack.c.l.b16 %v2071
        %v2111 = vunpack.c.l.b16 %v2072
        %v2112 = vpack.c.b16 %v2097, %v2096
        %v2113 = vpack.c.b16 %v2099, %v2098
        %v2114 = vpack.c.b16 %v2101, %v2100
        %v2115 = vpack.c.b16 %v2103, %v2102
        %v2116 = vpack.c.b16 %v2105, %v2104
        %v2117 = vpack.c.b16 %v2107, %v2106
        %v2118 = vpack.c.b16 %v2109, %v2108
        %v2119 = vpack.c.b16 %v2111, %v2110
        %2128 = vmatprep.subr.bf16.mxu0 0
        %2129 = vmatpush1.bf16.msra.mxu0 %v2112
        %2130 = vmatprep.subr.bf16.mxu0 0
        %2131 = vmatpush1.bf16.msra.mxu0 %v2113
        %2132 = vmatprep.subr.bf16.mxu0 0
        %2133 = vmatpush1.bf16.msra.mxu0 %v2114
        %2134 = vmatprep.subr.bf16.mxu0 0
        %2135 = vmatpush1.bf16.msra.mxu0 %v2115
        %2136 = vmatprep.subr.bf16.mxu0 0
        %2137 = vmatpush1.bf16.msra.mxu0 %v2116
        %2138 = vmatprep.subr.bf16.mxu0 0
        %2139 = vmatpush1.bf16.msra.mxu0 %v2117
        %2140 = vmatprep.subr.bf16.mxu0 0
        %2141 = vmatpush1.bf16.msra.mxu0 %v2118
        %2142 = vmatprep.subr.bf16.mxu0 0
        %2143 = vmatpush1.bf16.msra.mxu0 %v2119
        %2144 = vmatprep.subr.bf16.mxu0 0
        %2145 = vmatpush1.bf16.msra.mxu0 0
        %2146 = vmatprep.subr.bf16.mxu0 0
        %2147 = vmatpush1.bf16.msra.mxu0 0
        %2148 = vmatprep.subr.bf16.mxu0 0
        %2149 = vmatpush1.bf16.msra.mxu0 0
        %2150 = vmatprep.subr.bf16.mxu0 0
        %2151 = vmatpush1.bf16.msra.mxu0 0
        %2152 = vmatprep.subr.bf16.mxu0 0
        %2153 = vmatpush1.bf16.msra.mxu0 0
        %2154 = vmatprep.subr.bf16.mxu0 0
        %2155 = vmatpush1.bf16.msra.mxu0 0
        %2156 = vmatprep.subr.bf16.mxu0 0
        %2157 = vmatpush1.bf16.msra.mxu0 0
        %2158 = vmatprep.subr.bf16.mxu0 0
        %2159 = vmatpush1.bf16.msra.mxu0 0
        %2160 = vmatprep.mubr.bf16.mxu0 0
        %2161 = vmatmul.mubr.bf16.gmra.mrb[0].mxu0 %v2056
        %v2162 = vpop.f32.mrb[0].mxu0
        %v2163 = vadd.f32 %v2078, %v2162
        %v2164 = vpop.f32.mrb[0].mxu0
        %v2165 = vpop.f32.mrb[0].mxu0
        %v2166 = vpop.f32.mrb[0].mxu0
        %2167 = vdwg.mxu0
        %v2168 = vadd.f32 %v1932, %v2163
        %2169 = vst.msk [vmem:[#allocation2] sm:$0xff] %vm705, %v2168
        %p2170 = scmp.eq.s32.totalorder %s34, 1
        // Predicated region
        $region85: #{encoder_forward.1} parent=79 // pred_check
          %p2171 = pneg %p2170
        $region86: #{encoder_forward.1} parent=79 // pred_check_branch
          %2173 = sbr.rel (%p2171) target = $region88
        $region87: #{encoder_forward.1} parent=79 // pred_region
          %v2174 = vld [vmem:[%s13] sm:$0x1]
          %v2175 = vld [vmem:[%s14] sm:$0x1]
          %v2176 = vsel %vm705, %v2168, 0.0
          %2177 = vadd.xlane.f32.xlu0 %v2176
          %v2178 = vpop.xlane.xlu0 %2177
          %v2179 = vmul.f32 %v2178, %v709
          %v2180 = vsub.f32 %v2168, %v2179
          %v2181 = vmul.f32 %v2180, %v2180
          %v2182 = vsel %vm705, %v2181, 0.0
          %2183 = vadd.xlane.f32.xlu0 %v2182
          %v2184 = vpop.xlane.xlu0 %2183
          %v2185 = vmul.f32 %v2184, %v709
          %v2186 = vadd.f32 %v2185, 1e-05
          %v2187 = vrsqrt.pop %v2186
          %v2188 = vmul.f32 %v2180, %v2187
          %v2190 = vlaneseq
          %v2191 = vshrl.u32 %v2190, 7
          %v2192 = vsub.s32 0, %v2191
          %v2193 = vrot.slane %v2174, %v2192
          %v2195 = vmul.f32 %v2188, %v2193
          %v2197 = vlaneseq
          %v2198 = vshrl.u32 %v2197, 7
          %v2199 = vsub.s32 0, %v2198
          %v2200 = vrot.slane %v2175, %v2199
          %v2202 = vadd.f32 %v2195, %v2200
          %2203 = vst.msk [vmem:[%s645] sm:$0xff] %vm705, %v2202
        $region88: #{encoder_forward.1} parent=79 // pred_fallthru
          _
        %s2204 = sand.u32 %s429, 1
        %s2205 = scalar_lea.sflag [#allocation4], %s2204
        %s2206 = sand.u32 %s429, 1
        %s2207 = smul.addr %s2206, 8
        %s2208 = scalar_lea.vmem [#allocation3], %s2207
        // Predicated region
        $region89: #{encoder_forward.1} parent=79 // pred_check
          %p2209 = pneg %p439
        $region90: #{encoder_forward.1} parent=79 // pred_check_branch
          %2211 = sbr.rel (%p2209) target = $region92
        $region91: #{encoder_forward.1} parent=79 // pred_region
          %s2213 = ssub.s32 128, 128
          %2214 = vsyncadd %s2205, %s2213
          %s2215 = smul.addr %s33, 128
          %s2216 = scalar_lea.hbm %s15, %s2215
          %s2218 = sshll.u32 %s2208, 4
          %s2219 = int_to_ptr.vmem [resolvable:$true] %s2218
          %2221 = dma.vmem_to_hbm [thread:$0]  %s2219, 128, %s2216, %s2205
        $region92: #{encoder_forward.1} parent=79 // pred_fallthru
          _
      $region80: #{encoder_forward.1} parent=5 // pred_fallthru
        _
      %p2222 = scmp.le.s32.totalorder 2, %s24
      // Predicated region
      $region93: #{encoder_forward.1} parent=5 // pred_check
        %p2223 = pneg %p2222
      $region94: #{encoder_forward.1} parent=5 // pred_check_branch
        %2225 = sbr.rel (%p2223) target = $region96
      $region95: #{encoder_forward.1} parent=5 // pred_region
        %s2226 = ssub.s32 %s24, 2
        // Predicated region
        $region97: #{encoder_forward.1} parent=95 // pred_check
          %p2227 = pneg %p445
        $region98: #{encoder_forward.1} parent=95 // pred_check_branch
          %2229 = sbr.rel (%p2227) target = $region100
        $region99: #{encoder_forward.1} parent=95 // pred_region
          %s2230 = sand.u32 %s430, 1
          %s2231 = scalar_lea.sflag [#allocation4], %s2230
          %s2232 = sand.u32 %s430, 1
          %s2233 = smul.addr %s2232, 8
          %s2234 = scalar_lea.vmem [#allocation3], %s2233
          %2235 = dma.done %s2231, 128
        $region100: #{encoder_forward.1} parent=95 // pred_fallthru
          _
      $region96: #{encoder_forward.1} parent=5 // pred_fallthru
        _
    $region6: #{encoder_forward.1} parent=1 // loop_footer
      %s28 = sadd.s32 1, %s24
    $region7: #{encoder_forward.1} parent=1 // loop_footer_branch
      %23 = sbr.rel target = $region3
    $region8: #{encoder_forward.1} parent=1 // loop_exit
      _
    %2236 = vsyncpa [#allocation4], 1
    %s2237 = scalar_lea.sflag [#allocation4], 1
    %2238 = vsyncpa %s2237, 1

</llo_original>
